<compile_context>
chip_gen: v5e
topology: v5e:2x2
jax: 0.10.0
libtpu: 0.0.40
codegen_flags: <defaults>
</compile_context>

<pallas_src>
import functools

import jax
import jax.numpy as jnp
from jax.experimental import pallas as pl
from jax.experimental.pallas import tpu as pltpu


# ----------------------------- model sizes ---------------------------------
WE_DIM = 8        # word embedding dim
CE_DIM = 6        # char embedding dim
C_DIM = 16        # char LSTM hidden dim
H_DIM = 32        # word LSTM hidden dim
TAGSET = 8        # number of tags
WORD_VOCAB = 12
CHAR_VOCAB = 10

# synthetic "sentence": 5 words with these (static) character lengths
WORD_LENS = (3, 5, 2, 6, 4)
S = len(WORD_LENS)
LMAX = max(WORD_LENS)
SP = 8            # word axis padded to a full sublane tile for the char LSTM


def _lstm_cell(x_gates, h, c, whh, hdim):
    """PyTorch-style LSTM cell; x_gates already = x @ W_ih + b.

    One full-row sigmoid + one full-row tanh (EUP ops act on whole vregs),
    then slice out i/f/g/o."""
    g = x_gates + jnp.dot(h, whh, preferred_element_type=jnp.float32)
    sg = jax.nn.sigmoid(g)
    tg = jnp.tanh(g)
    i_g = sg[:, 0 * hdim:1 * hdim]
    f_g = sg[:, 1 * hdim:2 * hdim]
    g_g = tg[:, 2 * hdim:3 * hdim]
    o_g = sg[:, 3 * hdim:4 * hdim]
    c_new = f_g * c + i_g * g_g
    h_new = o_g * jnp.tanh(c_new)
    return h_new, c_new


def tagger_kernel(lens_ref, w_emb_ref, chars_ref,
                  c_wih_ref, c_whh_ref, c_b_ref,
                  wih_w_ref, wih_c_ref, b_ref,
                  whh_ref, wt_ref, bt_ref,
                  out_ref,
                  *, s, sp, lmax, c_dim, h_dim):
    """Whole forward pass for one sentence (grid=(1,), everything in VMEM)."""
    # ---- char LSTM: all words batched, LMAX masked steps -------------------
    # One fused input-gate matmul over every (time, word) position.
    xg_all = jnp.dot(chars_ref[...], c_wih_ref[...],
                     preferred_element_type=jnp.float32) + c_b_ref[...]  # (lmax*sp, 4c)

    h = jnp.zeros((sp, c_dim), jnp.float32)
    c = jnp.zeros((sp, c_dim), jnp.float32)
    lens = lens_ref[...]                                                 # (sp, 1) f32
    for t in range(lmax):                                                # static unroll
        xg_t = xg_all[t * sp:(t + 1) * sp, :]                            # aligned (sp, 4c)
        h_new, c_new = _lstm_cell(xg_t, h, c, c_whh_ref[...], c_dim)
        m = (lens > t).astype(jnp.float32)                               # freeze finished words
        h = m * h_new + (1.0 - m) * h
        c = m * c_new + (1.0 - m) * c
    # h: char-LSTM final hidden state of every word, shape (sp, c_dim)

    # ---- word LSTM input gates (split matmul: no lane concat needed) -------
    xg_word = (jnp.dot(w_emb_ref[...], wih_w_ref[...],
                       preferred_element_type=jnp.float32) +
               jnp.dot(h, wih_c_ref[...],
                       preferred_element_type=jnp.float32) +
               b_ref[...])                                               # (sp, 4h)

    # ---- word LSTM recurrence + hidden2tag + log_softmax(dim=1) ------------
    hw = jnp.zeros((1, h_dim), jnp.float32)
    cw = jnp.zeros((1, h_dim), jnp.float32)
    for t in range(s):                                                   # static unroll
        hw, cw = _lstm_cell(xg_word[t:t + 1, :], hw, cw, whh_ref[...], h_dim)
        tag_t = jnp.dot(hw, wt_ref[...],
                        preferred_element_type=jnp.float32) + bt_ref[...]  # (1, tags)
        mx = jnp.max(tag_t, axis=1, keepdims=True)
        z = tag_t - mx
        lse = jnp.log(jnp.sum(jnp.exp(z), axis=1, keepdims=True))
        out_ref[t:t + 1, :] = z - lse


def lstm_tagger_forward(w_embeds, c_embeds, params):
    """Wrapper: w_embeds (S, we_dim), c_embeds (S, Lmax, ce_dim) -> (S, TAGSET)."""
    (c_wih, c_whh, c_b, wih, whh, b, wt, bt) = params

    # layout plumbing (plain JAX): pad word axis to SP, time-major flatten the
    # char embeddings, pre-split wih into its word-emb / char-hidden halves.
    lens_p = jnp.array(list(WORD_LENS) + [0] * (SP - S),
                       jnp.float32).reshape(SP, 1)
    w_emb_p = jnp.pad(w_embeds, ((0, SP - S), (0, 0)))                   # (SP, we)
    chars_flat = jnp.pad(jnp.transpose(c_embeds, (1, 0, 2)),
                         ((0, 0), (0, SP - S), (0, 0))
                         ).reshape(LMAX * SP, CE_DIM)                    # (LMAX*SP, ce)
    wih_w = wih[:WE_DIM]                                                 # (we, 4h)
    wih_c = wih[WE_DIM:]                                                 # (c,  4h)

    kernel = functools.partial(tagger_kernel, s=S, sp=SP, lmax=LMAX,
                               c_dim=C_DIM, h_dim=H_DIM)

    full = lambda a: pl.BlockSpec(a.shape, lambda i: (0,) * a.ndim)
    args = (lens_p, w_emb_p, chars_flat, c_wih, c_whh, c_b,
            wih_w, wih_c, b, whh, wt, bt)

    return pl.pallas_call(
        kernel,
        out_shape=jax.ShapeDtypeStruct((S, TAGSET), jnp.float32),
        grid_spec=pltpu.PrefetchScalarGridSpec(
            num_scalar_prefetch=0,
            grid=(1,),
            in_specs=[full(a) for a in args],
            out_specs=pl.BlockSpec((S, TAGSET), lambda i: (0, 0))),
    )(*args)
    # TODO(synk): for real workloads, batch many sentences per pallas_call with
    # a "parallel" grid axis (uses both v7x TensorCores, amortizes launch cost).


# ------------------------- pure-JAX reference -------------------------------
def reference_forward(w_embeds, c_embeds, params):
    (c_wih, c_whh, c_b, wih, whh, b, wt, bt) = params
    embeds = []
    for i in range(S):
        xg = c_embeds[i] @ c_wih + c_b
        h = jnp.zeros((1, C_DIM)); c = jnp.zeros((1, C_DIM))
        for t in range(WORD_LENS[i]):
            h, c = _lstm_cell(xg[t:t + 1, :], h, c, c_whh, C_DIM)
        embeds.append(jnp.concatenate([w_embeds[i:i + 1, :], h], axis=1))
    embeds = jnp.concatenate(embeds, axis=0)
    xg = embeds @ wih + b
    h = jnp.zeros((1, H_DIM)); c = jnp.zeros((1, H_DIM))
    outs = []
    for t in range(S):
        h, c = _lstm_cell(xg[t:t + 1, :], h, c, whh, H_DIM)
        outs.append(h)
    out = jnp.concatenate(outs, axis=0)
    tag = out @ wt + bt
    return jax.nn.log_softmax(tag, axis=1)


# ------------------------------- main ---------------------------------------
if __name__ == "__main__":
    key = jax.random.PRNGKey(0)
    ks = jax.random.split(key, 12)
    u = lambda k, shape: jax.random.uniform(k, shape, jnp.float32, -0.1, 0.1)

    # embedding tables (nn.Embedding weights)
    w_table = u(ks[0], (WORD_VOCAB, WE_DIM))
    c_table = u(ks[1], (CHAR_VOCAB, CE_DIM))

    # char LSTM params (pre-transposed: (in, 4*hidden)), combined bias
    c_wih = u(ks[2], (CE_DIM, 4 * C_DIM))
    c_whh = u(ks[3], (C_DIM, 4 * C_DIM))
    c_b = u(ks[4], (1, 4 * C_DIM))
    # word LSTM params
    wih = u(ks[5], (WE_DIM + C_DIM, 4 * H_DIM))
    whh = u(ks[6], (H_DIM, 4 * H_DIM))
    b = u(ks[7], (1, 4 * H_DIM))
    # hidden2tag linear
    wt = u(ks[8], (H_DIM, TAGSET))
    bt = u(ks[9], (1, TAGSET))
    params = (c_wih, c_whh, c_b, wih, whh, b, wt, bt)

    # synthetic sentence: word indices and padded per-word char indices
    word_ids = jax.random.randint(ks[10], (S,), 0, WORD_VOCAB)
    char_ids = jax.random.randint(ks[11], (S, LMAX), 0, CHAR_VOCAB)

    # embedding lookups (glue, plain JAX gathers)
    w_embeds = w_table[word_ids]              # (S, WE_DIM)
    c_embeds = c_table[char_ids]              # (S, LMAX, CE_DIM)

    tag_scores = lstm_tagger_forward(w_embeds, c_embeds, params)
    jax.block_until_ready(tag_scores)

    ref = reference_forward(w_embeds, c_embeds, params)
    if not jnp.allclose(tag_scores, ref, atol=1e-5, rtol=1e-5):
        raise AssertionError("Pallas kernel output does not match reference")

    print("KERNEL_OK")
</pallas_src>

<mosaic_0001>
module attributes {stable_mosaic.version = 11 : i64} {
  func.func @tagger_kernel(%arg0: i32, %arg1: memref<8x1xf32, #tpu.memory_space<vmem>>, %arg2: memref<8x8xf32, #tpu.memory_space<vmem>>, %arg3: memref<48x6xf32, #tpu.memory_space<vmem>>, %arg4: memref<6x64xf32, #tpu.memory_space<vmem>>, %arg5: memref<16x64xf32, #tpu.memory_space<vmem>>, %arg6: memref<1x64xf32, #tpu.memory_space<vmem>>, %arg7: memref<8x128xf32, #tpu.memory_space<vmem>>, %arg8: memref<16x128xf32, #tpu.memory_space<vmem>>, %arg9: memref<1x128xf32, #tpu.memory_space<vmem>>, %arg10: memref<32x128xf32, #tpu.memory_space<vmem>>, %arg11: memref<32x8xf32, #tpu.memory_space<vmem>>, %arg12: memref<1x8xf32, #tpu.memory_space<vmem>>, %arg13: memref<5x8xf32, #tpu.memory_space<vmem>>) attributes {dimension_semantics = [#tpu.dimension_semantics<arbitrary>], iteration_bounds = array<i64: 1>, scalar_prefetch = 0 : i64, scratch_operands = 0 : i64, tpu.core_type = #tpu.core_type<tc>, window_params = [{pipeline_mode = #tpu.pipeline_mode<synchronous>, transform_indices = @transform_0, window_bounds = array<i64: 8, 1>}, {pipeline_mode = #tpu.pipeline_mode<synchronous>, transform_indices = @transform_1, window_bounds = array<i64: 8, 8>}, {pipeline_mode = #tpu.pipeline_mode<synchronous>, transform_indices = @transform_2, window_bounds = array<i64: 48, 6>}, {pipeline_mode = #tpu.pipeline_mode<synchronous>, transform_indices = @transform_3, window_bounds = array<i64: 6, 64>}, {pipeline_mode = #tpu.pipeline_mode<synchronous>, transform_indices = @transform_4, window_bounds = array<i64: 16, 64>}, {pipeline_mode = #tpu.pipeline_mode<synchronous>, transform_indices = @transform_5, window_bounds = array<i64: 1, 64>}, {pipeline_mode = #tpu.pipeline_mode<synchronous>, transform_indices = @transform_6, window_bounds = array<i64: 8, 128>}, {pipeline_mode = #tpu.pipeline_mode<synchronous>, transform_indices = @transform_7, window_bounds = array<i64: 16, 128>}, {pipeline_mode = #tpu.pipeline_mode<synchronous>, transform_indices = @transform_8, window_bounds = array<i64: 1, 128>}, {pipeline_mode = #tpu.pipeline_mode<synchronous>, transform_indices = @transform_9, window_bounds = array<i64: 32, 128>}, {pipeline_mode = #tpu.pipeline_mode<synchronous>, transform_indices = @transform_10, window_bounds = array<i64: 32, 8>}, {pipeline_mode = #tpu.pipeline_mode<synchronous>, transform_indices = @transform_11, window_bounds = array<i64: 1, 8>}, {pipeline_mode = #tpu.pipeline_mode<synchronous>, transform_indices = @transform_12, window_bounds = array<i64: 5, 8>}]} {
    %c0 = arith.constant 0 : index
    %c0_0 = arith.constant 0 : index
    %0 = vector.load %arg3[%c0, %c0_0] : memref<48x6xf32, #tpu.memory_space<vmem>>, vector<48x6xf32>
    %c0_1 = arith.constant 0 : index
    %c0_2 = arith.constant 0 : index
    %1 = vector.load %arg4[%c0_1, %c0_2] : memref<6x64xf32, #tpu.memory_space<vmem>>, vector<6x64xf32>
    %cst = arith.constant dense<0.000000e+00> : vector<48x64xf32>
    %2 = tpu.matmul %0, %1, %cst {dimension_numbers = #tpu.dot_dimension_numbers<[1], [0], [0], [1], [0, 0, 1, 1], [], []>} : vector<48x6xf32>, vector<6x64xf32>, vector<48x64xf32> -> vector<48x64xf32>
    %c0_3 = arith.constant 0 : index
    %c0_4 = arith.constant 0 : index
    %3 = vector.load %arg6[%c0_3, %c0_4] : memref<1x64xf32, #tpu.memory_space<vmem>>, vector<1x64xf32>
    %4 = vector.broadcast %3 : vector<1x64xf32> to vector<48x64xf32>
    %5 = arith.addf %2, %4 : vector<48x64xf32>
    %cst_5 = arith.constant 0.000000e+00 : f32
    %6 = vector.broadcast %cst_5 : f32 to vector<8x16xf32>
    %cst_6 = arith.constant 0.000000e+00 : f32
    %7 = vector.broadcast %cst_6 : f32 to vector<8x16xf32>
    %c0_7 = arith.constant 0 : index
    %c0_8 = arith.constant 0 : index
    %8 = vector.load %arg1[%c0_7, %c0_8] : memref<8x1xf32, #tpu.memory_space<vmem>>, vector<8x1xf32>
    %9 = vector.extract_strided_slice %5 {offsets = [0, 0], sizes = [8, 64], strides = [1, 1]} : vector<48x64xf32> to vector<8x64xf32>
    %c0_9 = arith.constant 0 : index
    %c0_10 = arith.constant 0 : index
    %10 = vector.load %arg5[%c0_9, %c0_10] : memref<16x64xf32, #tpu.memory_space<vmem>>, vector<16x64xf32>
    %cst_11 = arith.constant dense<0.000000e+00> : vector<8x64xf32>
    %11 = tpu.matmul %6, %10, %cst_11 {dimension_numbers = #tpu.dot_dimension_numbers<[1], [0], [0], [1], [0, 0, 1, 1], [], []>} : vector<8x16xf32>, vector<16x64xf32>, vector<8x64xf32> -> vector<8x64xf32>
    %12 = arith.addf %9, %11 : vector<8x64xf32>
    %13 = arith.negf %12 : vector<8x64xf32>
    %14 = math.exp %13 : vector<8x64xf32>
    %cst_12 = arith.constant 1.000000e+00 : f32
    %15 = vector.broadcast %cst_12 : f32 to vector<8x64xf32>
    %16 = arith.addf %15, %14 : vector<8x64xf32>
    %17 = arith.divf %15, %16 : vector<8x64xf32>
    %18 = math.tanh %12 : vector<8x64xf32>
    %19 = vector.extract_strided_slice %17 {offsets = [0, 0], sizes = [8, 16], strides = [1, 1]} : vector<8x64xf32> to vector<8x16xf32>
    %20 = vector.extract_strided_slice %17 {offsets = [0, 16], sizes = [8, 16], strides = [1, 1]} : vector<8x64xf32> to vector<8x16xf32>
    %21 = vector.extract_strided_slice %18 {offsets = [0, 32], sizes = [8, 16], strides = [1, 1]} : vector<8x64xf32> to vector<8x16xf32>
    %22 = vector.extract_strided_slice %17 {offsets = [0, 48], sizes = [8, 16], strides = [1, 1]} : vector<8x64xf32> to vector<8x16xf32>
    %23 = arith.mulf %20, %7 : vector<8x16xf32>
    %24 = arith.mulf %19, %21 : vector<8x16xf32>
    %25 = arith.addf %23, %24 : vector<8x16xf32>
    %26 = math.tanh %25 : vector<8x16xf32>
    %27 = arith.mulf %22, %26 : vector<8x16xf32>
    %cst_13 = arith.constant 0.000000e+00 : f32
    %28 = vector.broadcast %cst_13 : f32 to vector<8x1xf32>
    %29 = arith.cmpf ogt, %8, %28 : vector<8x1xf32>
    %30 = arith.extui %29 : vector<8x1xi1> to vector<8x1xi32>
    %31 = arith.sitofp %30 : vector<8x1xi32> to vector<8x1xf32>
    %32 = vector.broadcast %31 : vector<8x1xf32> to vector<8x16xf32>
    %33 = arith.mulf %32, %27 : vector<8x16xf32>
    %cst_14 = arith.constant 1.000000e+00 : f32
    %34 = vector.broadcast %cst_14 : f32 to vector<8x1xf32>
    %35 = arith.subf %34, %31 : vector<8x1xf32>
    %36 = vector.broadcast %35 : vector<8x1xf32> to vector<8x16xf32>
    %37 = arith.mulf %36, %6 : vector<8x16xf32>
    %38 = arith.addf %33, %37 : vector<8x16xf32>
    %39 = vector.broadcast %31 : vector<8x1xf32> to vector<8x16xf32>
    %40 = arith.mulf %39, %25 : vector<8x16xf32>
    %cst_15 = arith.constant 1.000000e+00 : f32
    %41 = vector.broadcast %cst_15 : f32 to vector<8x1xf32>
    %42 = arith.subf %41, %31 : vector<8x1xf32>
    %43 = vector.broadcast %42 : vector<8x1xf32> to vector<8x16xf32>
    %44 = arith.mulf %43, %7 : vector<8x16xf32>
    %45 = arith.addf %40, %44 : vector<8x16xf32>
    %46 = vector.extract_strided_slice %5 {offsets = [8, 0], sizes = [8, 64], strides = [1, 1]} : vector<48x64xf32> to vector<8x64xf32>
    %c0_16 = arith.constant 0 : index
    %c0_17 = arith.constant 0 : index
    %47 = vector.load %arg5[%c0_16, %c0_17] : memref<16x64xf32, #tpu.memory_space<vmem>>, vector<16x64xf32>
    %cst_18 = arith.constant dense<0.000000e+00> : vector<8x64xf32>
    %48 = tpu.matmul %38, %47, %cst_18 {dimension_numbers = #tpu.dot_dimension_numbers<[1], [0], [0], [1], [0, 0, 1, 1], [], []>} : vector<8x16xf32>, vector<16x64xf32>, vector<8x64xf32> -> vector<8x64xf32>
    %49 = arith.addf %46, %48 : vector<8x64xf32>
    %50 = arith.negf %49 : vector<8x64xf32>
    %51 = math.exp %50 : vector<8x64xf32>
    %cst_19 = arith.constant 1.000000e+00 : f32
    %52 = vector.broadcast %cst_19 : f32 to vector<8x64xf32>
    %53 = arith.addf %52, %51 : vector<8x64xf32>
    %54 = arith.divf %52, %53 : vector<8x64xf32>
    %55 = math.tanh %49 : vector<8x64xf32>
    %56 = vector.extract_strided_slice %54 {offsets = [0, 0], sizes = [8, 16], strides = [1, 1]} : vector<8x64xf32> to vector<8x16xf32>
    %57 = vector.extract_strided_slice %54 {offsets = [0, 16], sizes = [8, 16], strides = [1, 1]} : vector<8x64xf32> to vector<8x16xf32>
    %58 = vector.extract_strided_slice %55 {offsets = [0, 32], sizes = [8, 16], strides = [1, 1]} : vector<8x64xf32> to vector<8x16xf32>
    %59 = vector.extract_strided_slice %54 {offsets = [0, 48], sizes = [8, 16], strides = [1, 1]} : vector<8x64xf32> to vector<8x16xf32>
    %60 = arith.mulf %57, %45 : vector<8x16xf32>
    %61 = arith.mulf %56, %58 : vector<8x16xf32>
    %62 = arith.addf %60, %61 : vector<8x16xf32>
    %63 = math.tanh %62 : vector<8x16xf32>
    %64 = arith.mulf %59, %63 : vector<8x16xf32>
    %cst_20 = arith.constant 1.000000e+00 : f32
    %65 = vector.broadcast %cst_20 : f32 to vector<8x1xf32>
    %66 = arith.cmpf ogt, %8, %65 : vector<8x1xf32>
    %67 = arith.extui %66 : vector<8x1xi1> to vector<8x1xi32>
    %68 = arith.sitofp %67 : vector<8x1xi32> to vector<8x1xf32>
    %69 = vector.broadcast %68 : vector<8x1xf32> to vector<8x16xf32>
    %70 = arith.mulf %69, %64 : vector<8x16xf32>
    %cst_21 = arith.constant 1.000000e+00 : f32
    %71 = vector.broadcast %cst_21 : f32 to vector<8x1xf32>
    %72 = arith.subf %71, %68 : vector<8x1xf32>
    %73 = vector.broadcast %72 : vector<8x1xf32> to vector<8x16xf32>
    %74 = arith.mulf %73, %38 : vector<8x16xf32>
    %75 = arith.addf %70, %74 : vector<8x16xf32>
    %76 = vector.broadcast %68 : vector<8x1xf32> to vector<8x16xf32>
    %77 = arith.mulf %76, %62 : vector<8x16xf32>
    %cst_22 = arith.constant 1.000000e+00 : f32
    %78 = vector.broadcast %cst_22 : f32 to vector<8x1xf32>
    %79 = arith.subf %78, %68 : vector<8x1xf32>
    %80 = vector.broadcast %79 : vector<8x1xf32> to vector<8x16xf32>
    %81 = arith.mulf %80, %45 : vector<8x16xf32>
    %82 = arith.addf %77, %81 : vector<8x16xf32>
    %83 = vector.extract_strided_slice %5 {offsets = [16, 0], sizes = [8, 64], strides = [1, 1]} : vector<48x64xf32> to vector<8x64xf32>
    %c0_23 = arith.constant 0 : index
    %c0_24 = arith.constant 0 : index
    %84 = vector.load %arg5[%c0_23, %c0_24] : memref<16x64xf32, #tpu.memory_space<vmem>>, vector<16x64xf32>
    %cst_25 = arith.constant dense<0.000000e+00> : vector<8x64xf32>
    %85 = tpu.matmul %75, %84, %cst_25 {dimension_numbers = #tpu.dot_dimension_numbers<[1], [0], [0], [1], [0, 0, 1, 1], [], []>} : vector<8x16xf32>, vector<16x64xf32>, vector<8x64xf32> -> vector<8x64xf32>
    %86 = arith.addf %83, %85 : vector<8x64xf32>
    %87 = arith.negf %86 : vector<8x64xf32>
    %88 = math.exp %87 : vector<8x64xf32>
    %cst_26 = arith.constant 1.000000e+00 : f32
    %89 = vector.broadcast %cst_26 : f32 to vector<8x64xf32>
    %90 = arith.addf %89, %88 : vector<8x64xf32>
    %91 = arith.divf %89, %90 : vector<8x64xf32>
    %92 = math.tanh %86 : vector<8x64xf32>
    %93 = vector.extract_strided_slice %91 {offsets = [0, 0], sizes = [8, 16], strides = [1, 1]} : vector<8x64xf32> to vector<8x16xf32>
    %94 = vector.extract_strided_slice %91 {offsets = [0, 16], sizes = [8, 16], strides = [1, 1]} : vector<8x64xf32> to vector<8x16xf32>
    %95 = vector.extract_strided_slice %92 {offsets = [0, 32], sizes = [8, 16], strides = [1, 1]} : vector<8x64xf32> to vector<8x16xf32>
    %96 = vector.extract_strided_slice %91 {offsets = [0, 48], sizes = [8, 16], strides = [1, 1]} : vector<8x64xf32> to vector<8x16xf32>
    %97 = arith.mulf %94, %82 : vector<8x16xf32>
    %98 = arith.mulf %93, %95 : vector<8x16xf32>
    %99 = arith.addf %97, %98 : vector<8x16xf32>
    %100 = math.tanh %99 : vector<8x16xf32>
    %101 = arith.mulf %96, %100 : vector<8x16xf32>
    %cst_27 = arith.constant 2.000000e+00 : f32
    %102 = vector.broadcast %cst_27 : f32 to vector<8x1xf32>
    %103 = arith.cmpf ogt, %8, %102 : vector<8x1xf32>
    %104 = arith.extui %103 : vector<8x1xi1> to vector<8x1xi32>
    %105 = arith.sitofp %104 : vector<8x1xi32> to vector<8x1xf32>
    %106 = vector.broadcast %105 : vector<8x1xf32> to vector<8x16xf32>
    %107 = arith.mulf %106, %101 : vector<8x16xf32>
    %cst_28 = arith.constant 1.000000e+00 : f32
    %108 = vector.broadcast %cst_28 : f32 to vector<8x1xf32>
    %109 = arith.subf %108, %105 : vector<8x1xf32>
    %110 = vector.broadcast %109 : vector<8x1xf32> to vector<8x16xf32>
    %111 = arith.mulf %110, %75 : vector<8x16xf32>
    %112 = arith.addf %107, %111 : vector<8x16xf32>
    %113 = vector.broadcast %105 : vector<8x1xf32> to vector<8x16xf32>
    %114 = arith.mulf %113, %99 : vector<8x16xf32>
    %cst_29 = arith.constant 1.000000e+00 : f32
    %115 = vector.broadcast %cst_29 : f32 to vector<8x1xf32>
    %116 = arith.subf %115, %105 : vector<8x1xf32>
    %117 = vector.broadcast %116 : vector<8x1xf32> to vector<8x16xf32>
    %118 = arith.mulf %117, %82 : vector<8x16xf32>
    %119 = arith.addf %114, %118 : vector<8x16xf32>
    %120 = vector.extract_strided_slice %5 {offsets = [24, 0], sizes = [8, 64], strides = [1, 1]} : vector<48x64xf32> to vector<8x64xf32>
    %c0_30 = arith.constant 0 : index
    %c0_31 = arith.constant 0 : index
    %121 = vector.load %arg5[%c0_30, %c0_31] : memref<16x64xf32, #tpu.memory_space<vmem>>, vector<16x64xf32>
    %cst_32 = arith.constant dense<0.000000e+00> : vector<8x64xf32>
    %122 = tpu.matmul %112, %121, %cst_32 {dimension_numbers = #tpu.dot_dimension_numbers<[1], [0], [0], [1], [0, 0, 1, 1], [], []>} : vector<8x16xf32>, vector<16x64xf32>, vector<8x64xf32> -> vector<8x64xf32>
    %123 = arith.addf %120, %122 : vector<8x64xf32>
    %124 = arith.negf %123 : vector<8x64xf32>
    %125 = math.exp %124 : vector<8x64xf32>
    %cst_33 = arith.constant 1.000000e+00 : f32
    %126 = vector.broadcast %cst_33 : f32 to vector<8x64xf32>
    %127 = arith.addf %126, %125 : vector<8x64xf32>
    %128 = arith.divf %126, %127 : vector<8x64xf32>
    %129 = math.tanh %123 : vector<8x64xf32>
    %130 = vector.extract_strided_slice %128 {offsets = [0, 0], sizes = [8, 16], strides = [1, 1]} : vector<8x64xf32> to vector<8x16xf32>
    %131 = vector.extract_strided_slice %128 {offsets = [0, 16], sizes = [8, 16], strides = [1, 1]} : vector<8x64xf32> to vector<8x16xf32>
    %132 = vector.extract_strided_slice %129 {offsets = [0, 32], sizes = [8, 16], strides = [1, 1]} : vector<8x64xf32> to vector<8x16xf32>
    %133 = vector.extract_strided_slice %128 {offsets = [0, 48], sizes = [8, 16], strides = [1, 1]} : vector<8x64xf32> to vector<8x16xf32>
    %134 = arith.mulf %131, %119 : vector<8x16xf32>
    %135 = arith.mulf %130, %132 : vector<8x16xf32>
    %136 = arith.addf %134, %135 : vector<8x16xf32>
    %137 = math.tanh %136 : vector<8x16xf32>
    %138 = arith.mulf %133, %137 : vector<8x16xf32>
    %cst_34 = arith.constant 3.000000e+00 : f32
    %139 = vector.broadcast %cst_34 : f32 to vector<8x1xf32>
    %140 = arith.cmpf ogt, %8, %139 : vector<8x1xf32>
    %141 = arith.extui %140 : vector<8x1xi1> to vector<8x1xi32>
    %142 = arith.sitofp %141 : vector<8x1xi32> to vector<8x1xf32>
    %143 = vector.broadcast %142 : vector<8x1xf32> to vector<8x16xf32>
    %144 = arith.mulf %143, %138 : vector<8x16xf32>
    %cst_35 = arith.constant 1.000000e+00 : f32
    %145 = vector.broadcast %cst_35 : f32 to vector<8x1xf32>
    %146 = arith.subf %145, %142 : vector<8x1xf32>
    %147 = vector.broadcast %146 : vector<8x1xf32> to vector<8x16xf32>
    %148 = arith.mulf %147, %112 : vector<8x16xf32>
    %149 = arith.addf %144, %148 : vector<8x16xf32>
    %150 = vector.broadcast %142 : vector<8x1xf32> to vector<8x16xf32>
    %151 = arith.mulf %150, %136 : vector<8x16xf32>
    %cst_36 = arith.constant 1.000000e+00 : f32
    %152 = vector.broadcast %cst_36 : f32 to vector<8x1xf32>
    %153 = arith.subf %152, %142 : vector<8x1xf32>
    %154 = vector.broadcast %153 : vector<8x1xf32> to vector<8x16xf32>
    %155 = arith.mulf %154, %119 : vector<8x16xf32>
    %156 = arith.addf %151, %155 : vector<8x16xf32>
    %157 = vector.extract_strided_slice %5 {offsets = [32, 0], sizes = [8, 64], strides = [1, 1]} : vector<48x64xf32> to vector<8x64xf32>
    %c0_37 = arith.constant 0 : index
    %c0_38 = arith.constant 0 : index
    %158 = vector.load %arg5[%c0_37, %c0_38] : memref<16x64xf32, #tpu.memory_space<vmem>>, vector<16x64xf32>
    %cst_39 = arith.constant dense<0.000000e+00> : vector<8x64xf32>
    %159 = tpu.matmul %149, %158, %cst_39 {dimension_numbers = #tpu.dot_dimension_numbers<[1], [0], [0], [1], [0, 0, 1, 1], [], []>} : vector<8x16xf32>, vector<16x64xf32>, vector<8x64xf32> -> vector<8x64xf32>
    %160 = arith.addf %157, %159 : vector<8x64xf32>
    %161 = arith.negf %160 : vector<8x64xf32>
    %162 = math.exp %161 : vector<8x64xf32>
    %cst_40 = arith.constant 1.000000e+00 : f32
    %163 = vector.broadcast %cst_40 : f32 to vector<8x64xf32>
    %164 = arith.addf %163, %162 : vector<8x64xf32>
    %165 = arith.divf %163, %164 : vector<8x64xf32>
    %166 = math.tanh %160 : vector<8x64xf32>
    %167 = vector.extract_strided_slice %165 {offsets = [0, 0], sizes = [8, 16], strides = [1, 1]} : vector<8x64xf32> to vector<8x16xf32>
    %168 = vector.extract_strided_slice %165 {offsets = [0, 16], sizes = [8, 16], strides = [1, 1]} : vector<8x64xf32> to vector<8x16xf32>
    %169 = vector.extract_strided_slice %166 {offsets = [0, 32], sizes = [8, 16], strides = [1, 1]} : vector<8x64xf32> to vector<8x16xf32>
    %170 = vector.extract_strided_slice %165 {offsets = [0, 48], sizes = [8, 16], strides = [1, 1]} : vector<8x64xf32> to vector<8x16xf32>
    %171 = arith.mulf %168, %156 : vector<8x16xf32>
    %172 = arith.mulf %167, %169 : vector<8x16xf32>
    %173 = arith.addf %171, %172 : vector<8x16xf32>
    %174 = math.tanh %173 : vector<8x16xf32>
    %175 = arith.mulf %170, %174 : vector<8x16xf32>
    %cst_41 = arith.constant 4.000000e+00 : f32
    %176 = vector.broadcast %cst_41 : f32 to vector<8x1xf32>
    %177 = arith.cmpf ogt, %8, %176 : vector<8x1xf32>
    %178 = arith.extui %177 : vector<8x1xi1> to vector<8x1xi32>
    %179 = arith.sitofp %178 : vector<8x1xi32> to vector<8x1xf32>
    %180 = vector.broadcast %179 : vector<8x1xf32> to vector<8x16xf32>
    %181 = arith.mulf %180, %175 : vector<8x16xf32>
    %cst_42 = arith.constant 1.000000e+00 : f32
    %182 = vector.broadcast %cst_42 : f32 to vector<8x1xf32>
    %183 = arith.subf %182, %179 : vector<8x1xf32>
    %184 = vector.broadcast %183 : vector<8x1xf32> to vector<8x16xf32>
    %185 = arith.mulf %184, %149 : vector<8x16xf32>
    %186 = arith.addf %181, %185 : vector<8x16xf32>
    %187 = vector.broadcast %179 : vector<8x1xf32> to vector<8x16xf32>
    %188 = arith.mulf %187, %173 : vector<8x16xf32>
    %cst_43 = arith.constant 1.000000e+00 : f32
    %189 = vector.broadcast %cst_43 : f32 to vector<8x1xf32>
    %190 = arith.subf %189, %179 : vector<8x1xf32>
    %191 = vector.broadcast %190 : vector<8x1xf32> to vector<8x16xf32>
    %192 = arith.mulf %191, %156 : vector<8x16xf32>
    %193 = arith.addf %188, %192 : vector<8x16xf32>
    %194 = vector.extract_strided_slice %5 {offsets = [40, 0], sizes = [8, 64], strides = [1, 1]} : vector<48x64xf32> to vector<8x64xf32>
    %c0_44 = arith.constant 0 : index
    %c0_45 = arith.constant 0 : index
    %195 = vector.load %arg5[%c0_44, %c0_45] : memref<16x64xf32, #tpu.memory_space<vmem>>, vector<16x64xf32>
    %cst_46 = arith.constant dense<0.000000e+00> : vector<8x64xf32>
    %196 = tpu.matmul %186, %195, %cst_46 {dimension_numbers = #tpu.dot_dimension_numbers<[1], [0], [0], [1], [0, 0, 1, 1], [], []>} : vector<8x16xf32>, vector<16x64xf32>, vector<8x64xf32> -> vector<8x64xf32>
    %197 = arith.addf %194, %196 : vector<8x64xf32>
    %198 = arith.negf %197 : vector<8x64xf32>
    %199 = math.exp %198 : vector<8x64xf32>
    %cst_47 = arith.constant 1.000000e+00 : f32
    %200 = vector.broadcast %cst_47 : f32 to vector<8x64xf32>
    %201 = arith.addf %200, %199 : vector<8x64xf32>
    %202 = arith.divf %200, %201 : vector<8x64xf32>
    %203 = math.tanh %197 : vector<8x64xf32>
    %204 = vector.extract_strided_slice %202 {offsets = [0, 0], sizes = [8, 16], strides = [1, 1]} : vector<8x64xf32> to vector<8x16xf32>
    %205 = vector.extract_strided_slice %202 {offsets = [0, 16], sizes = [8, 16], strides = [1, 1]} : vector<8x64xf32> to vector<8x16xf32>
    %206 = vector.extract_strided_slice %203 {offsets = [0, 32], sizes = [8, 16], strides = [1, 1]} : vector<8x64xf32> to vector<8x16xf32>
    %207 = vector.extract_strided_slice %202 {offsets = [0, 48], sizes = [8, 16], strides = [1, 1]} : vector<8x64xf32> to vector<8x16xf32>
    %208 = arith.mulf %205, %193 : vector<8x16xf32>
    %209 = arith.mulf %204, %206 : vector<8x16xf32>
    %210 = arith.addf %208, %209 : vector<8x16xf32>
    %211 = math.tanh %210 : vector<8x16xf32>
    %212 = arith.mulf %207, %211 : vector<8x16xf32>
    %cst_48 = arith.constant 5.000000e+00 : f32
    %213 = vector.broadcast %cst_48 : f32 to vector<8x1xf32>
    %214 = arith.cmpf ogt, %8, %213 : vector<8x1xf32>
    %215 = arith.extui %214 : vector<8x1xi1> to vector<8x1xi32>
    %216 = arith.sitofp %215 : vector<8x1xi32> to vector<8x1xf32>
    %217 = vector.broadcast %216 : vector<8x1xf32> to vector<8x16xf32>
    %218 = arith.mulf %217, %212 : vector<8x16xf32>
    %cst_49 = arith.constant 1.000000e+00 : f32
    %219 = vector.broadcast %cst_49 : f32 to vector<8x1xf32>
    %220 = arith.subf %219, %216 : vector<8x1xf32>
    %221 = vector.broadcast %220 : vector<8x1xf32> to vector<8x16xf32>
    %222 = arith.mulf %221, %186 : vector<8x16xf32>
    %223 = arith.addf %218, %222 : vector<8x16xf32>
    %c0_50 = arith.constant 0 : index
    %c0_51 = arith.constant 0 : index
    %224 = vector.load %arg2[%c0_50, %c0_51] : memref<8x8xf32, #tpu.memory_space<vmem>>, vector<8x8xf32>
    %c0_52 = arith.constant 0 : index
    %c0_53 = arith.constant 0 : index
    %225 = vector.load %arg7[%c0_52, %c0_53] : memref<8x128xf32, #tpu.memory_space<vmem>>, vector<8x128xf32>
    %cst_54 = arith.constant dense<0.000000e+00> : vector<8x128xf32>
    %226 = tpu.matmul %224, %225, %cst_54 {dimension_numbers = #tpu.dot_dimension_numbers<[1], [0], [0], [1], [0, 0, 1, 1], [], []>} : vector<8x8xf32>, vector<8x128xf32>, vector<8x128xf32> -> vector<8x128xf32>
    %c0_55 = arith.constant 0 : index
    %c0_56 = arith.constant 0 : index
    %227 = vector.load %arg8[%c0_55, %c0_56] : memref<16x128xf32, #tpu.memory_space<vmem>>, vector<16x128xf32>
    %cst_57 = arith.constant dense<0.000000e+00> : vector<8x128xf32>
    %228 = tpu.matmul %223, %227, %cst_57 {dimension_numbers = #tpu.dot_dimension_numbers<[1], [0], [0], [1], [0, 0, 1, 1], [], []>} : vector<8x16xf32>, vector<16x128xf32>, vector<8x128xf32> -> vector<8x128xf32>
    %229 = arith.addf %226, %228 : vector<8x128xf32>
    %c0_58 = arith.constant 0 : index
    %c0_59 = arith.constant 0 : index
    %230 = vector.load %arg9[%c0_58, %c0_59] : memref<1x128xf32, #tpu.memory_space<vmem>>, vector<1x128xf32>
    %231 = vector.broadcast %230 : vector<1x128xf32> to vector<8x128xf32>
    %232 = arith.addf %229, %231 : vector<8x128xf32>
    %cst_60 = arith.constant 0.000000e+00 : f32
    %233 = vector.broadcast %cst_60 : f32 to vector<1x32xf32>
    %cst_61 = arith.constant 0.000000e+00 : f32
    %234 = vector.broadcast %cst_61 : f32 to vector<1x32xf32>
    %235 = vector.extract_strided_slice %232 {offsets = [0, 0], sizes = [1, 128], strides = [1, 1]} : vector<8x128xf32> to vector<1x128xf32>
    %c0_62 = arith.constant 0 : index
    %c0_63 = arith.constant 0 : index
    %236 = vector.load %arg10[%c0_62, %c0_63] : memref<32x128xf32, #tpu.memory_space<vmem>>, vector<32x128xf32>
    %cst_64 = arith.constant dense<0.000000e+00> : vector<1x128xf32>
    %237 = tpu.matmul %233, %236, %cst_64 {dimension_numbers = #tpu.dot_dimension_numbers<[1], [0], [0], [1], [0, 0, 1, 1], [], []>} : vector<1x32xf32>, vector<32x128xf32>, vector<1x128xf32> -> vector<1x128xf32>
    %238 = arith.addf %235, %237 : vector<1x128xf32>
    %239 = arith.negf %238 : vector<1x128xf32>
    %240 = math.exp %239 : vector<1x128xf32>
    %cst_65 = arith.constant 1.000000e+00 : f32
    %241 = vector.broadcast %cst_65 : f32 to vector<1x128xf32>
    %242 = arith.addf %241, %240 : vector<1x128xf32>
    %243 = arith.divf %241, %242 : vector<1x128xf32>
    %244 = math.tanh %238 : vector<1x128xf32>
    %245 = vector.extract_strided_slice %243 {offsets = [0, 0], sizes = [1, 32], strides = [1, 1]} : vector<1x128xf32> to vector<1x32xf32>
    %246 = vector.extract_strided_slice %243 {offsets = [0, 32], sizes = [1, 32], strides = [1, 1]} : vector<1x128xf32> to vector<1x32xf32>
    %247 = vector.extract_strided_slice %244 {offsets = [0, 64], sizes = [1, 32], strides = [1, 1]} : vector<1x128xf32> to vector<1x32xf32>
    %248 = vector.extract_strided_slice %243 {offsets = [0, 96], sizes = [1, 32], strides = [1, 1]} : vector<1x128xf32> to vector<1x32xf32>
    %249 = arith.mulf %246, %234 : vector<1x32xf32>
    %250 = arith.mulf %245, %247 : vector<1x32xf32>
    %251 = arith.addf %249, %250 : vector<1x32xf32>
    %252 = math.tanh %251 : vector<1x32xf32>
    %253 = arith.mulf %248, %252 : vector<1x32xf32>
    %c0_66 = arith.constant 0 : index
    %c0_67 = arith.constant 0 : index
    %254 = vector.load %arg11[%c0_66, %c0_67] : memref<32x8xf32, #tpu.memory_space<vmem>>, vector<32x8xf32>
    %cst_68 = arith.constant dense<0.000000e+00> : vector<1x8xf32>
    %255 = tpu.matmul %253, %254, %cst_68 {dimension_numbers = #tpu.dot_dimension_numbers<[1], [0], [0], [1], [0, 0, 1, 1], [], []>} : vector<1x32xf32>, vector<32x8xf32>, vector<1x8xf32> -> vector<1x8xf32>
    %c0_69 = arith.constant 0 : index
    %c0_70 = arith.constant 0 : index
    %256 = vector.load %arg12[%c0_69, %c0_70] : memref<1x8xf32, #tpu.memory_space<vmem>>, vector<1x8xf32>
    %257 = arith.addf %255, %256 : vector<1x8xf32>
    %cst_71 = arith.constant dense<0xFF800000> : vector<1xf32>
    %258 = vector.multi_reduction <maximumf>, %257, %cst_71 [1] : vector<1x8xf32> to vector<1xf32>
    %259 = vector.shape_cast %258 : vector<1xf32> to vector<1x1xf32>
    %260 = vector.broadcast %259 : vector<1x1xf32> to vector<1x8xf32>
    %261 = arith.subf %257, %260 : vector<1x8xf32>
    %262 = math.exp %261 : vector<1x8xf32>
    %cst_72 = arith.constant dense<0.000000e+00> : vector<1xf32>
    %263 = vector.multi_reduction <add>, %262, %cst_72 [1] : vector<1x8xf32> to vector<1xf32>
    %264 = vector.shape_cast %263 : vector<1xf32> to vector<1x1xf32>
    %265 = math.log %264 : vector<1x1xf32>
    %266 = vector.broadcast %265 : vector<1x1xf32> to vector<1x8xf32>
    %267 = arith.subf %261, %266 : vector<1x8xf32>
    %c0_73 = arith.constant 0 : index
    %c0_74 = arith.constant 0 : index
    %268 = vector.load %arg13[%c0_73, %c0_74] : memref<5x8xf32, #tpu.memory_space<vmem>>, vector<1x8xf32>
    tpu.vector_store %arg13[%c0_73, %c0_74], %267 {strides = array<i32>} : memref<5x8xf32, #tpu.memory_space<vmem>>, vector<1x8xf32>,
    %269 = vector.extract_strided_slice %232 {offsets = [1, 0], sizes = [1, 128], strides = [1, 1]} : vector<8x128xf32> to vector<1x128xf32>
    %c0_75 = arith.constant 0 : index
    %c0_76 = arith.constant 0 : index
    %270 = vector.load %arg10[%c0_75, %c0_76] : memref<32x128xf32, #tpu.memory_space<vmem>>, vector<32x128xf32>
    %cst_77 = arith.constant dense<0.000000e+00> : vector<1x128xf32>
    %271 = tpu.matmul %253, %270, %cst_77 {dimension_numbers = #tpu.dot_dimension_numbers<[1], [0], [0], [1], [0, 0, 1, 1], [], []>} : vector<1x32xf32>, vector<32x128xf32>, vector<1x128xf32> -> vector<1x128xf32>
    %272 = arith.addf %269, %271 : vector<1x128xf32>
    %273 = arith.negf %272 : vector<1x128xf32>
    %274 = math.exp %273 : vector<1x128xf32>
    %cst_78 = arith.constant 1.000000e+00 : f32
    %275 = vector.broadcast %cst_78 : f32 to vector<1x128xf32>
    %276 = arith.addf %275, %274 : vector<1x128xf32>
    %277 = arith.divf %275, %276 : vector<1x128xf32>
    %278 = math.tanh %272 : vector<1x128xf32>
    %279 = vector.extract_strided_slice %277 {offsets = [0, 0], sizes = [1, 32], strides = [1, 1]} : vector<1x128xf32> to vector<1x32xf32>
    %280 = vector.extract_strided_slice %277 {offsets = [0, 32], sizes = [1, 32], strides = [1, 1]} : vector<1x128xf32> to vector<1x32xf32>
    %281 = vector.extract_strided_slice %278 {offsets = [0, 64], sizes = [1, 32], strides = [1, 1]} : vector<1x128xf32> to vector<1x32xf32>
    %282 = vector.extract_strided_slice %277 {offsets = [0, 96], sizes = [1, 32], strides = [1, 1]} : vector<1x128xf32> to vector<1x32xf32>
    %283 = arith.mulf %280, %251 : vector<1x32xf32>
    %284 = arith.mulf %279, %281 : vector<1x32xf32>
    %285 = arith.addf %283, %284 : vector<1x32xf32>
    %286 = math.tanh %285 : vector<1x32xf32>
    %287 = arith.mulf %282, %286 : vector<1x32xf32>
    %c0_79 = arith.constant 0 : index
    %c0_80 = arith.constant 0 : index
    %288 = vector.load %arg11[%c0_79, %c0_80] : memref<32x8xf32, #tpu.memory_space<vmem>>, vector<32x8xf32>
    %cst_81 = arith.constant dense<0.000000e+00> : vector<1x8xf32>
    %289 = tpu.matmul %287, %288, %cst_81 {dimension_numbers = #tpu.dot_dimension_numbers<[1], [0], [0], [1], [0, 0, 1, 1], [], []>} : vector<1x32xf32>, vector<32x8xf32>, vector<1x8xf32> -> vector<1x8xf32>
    %c0_82 = arith.constant 0 : index
    %c0_83 = arith.constant 0 : index
    %290 = vector.load %arg12[%c0_82, %c0_83] : memref<1x8xf32, #tpu.memory_space<vmem>>, vector<1x8xf32>
    %291 = arith.addf %289, %290 : vector<1x8xf32>
    %cst_84 = arith.constant dense<0xFF800000> : vector<1xf32>
    %292 = vector.multi_reduction <maximumf>, %291, %cst_84 [1] : vector<1x8xf32> to vector<1xf32>
    %293 = vector.shape_cast %292 : vector<1xf32> to vector<1x1xf32>
    %294 = vector.broadcast %293 : vector<1x1xf32> to vector<1x8xf32>
    %295 = arith.subf %291, %294 : vector<1x8xf32>
    %296 = math.exp %295 : vector<1x8xf32>
    %cst_85 = arith.constant dense<0.000000e+00> : vector<1xf32>
    %297 = vector.multi_reduction <add>, %296, %cst_85 [1] : vector<1x8xf32> to vector<1xf32>
    %298 = vector.shape_cast %297 : vector<1xf32> to vector<1x1xf32>
    %299 = math.log %298 : vector<1x1xf32>
    %300 = vector.broadcast %299 : vector<1x1xf32> to vector<1x8xf32>
    %301 = arith.subf %295, %300 : vector<1x8xf32>
    %c1 = arith.constant 1 : index
    %c0_86 = arith.constant 0 : index
    %302 = vector.load %arg13[%c1, %c0_86] : memref<5x8xf32, #tpu.memory_space<vmem>>, vector<1x8xf32>
    tpu.vector_store %arg13[%c1, %c0_86], %301 {strides = array<i32>} : memref<5x8xf32, #tpu.memory_space<vmem>>, vector<1x8xf32>,
    %303 = vector.extract_strided_slice %232 {offsets = [2, 0], sizes = [1, 128], strides = [1, 1]} : vector<8x128xf32> to vector<1x128xf32>
    %c0_87 = arith.constant 0 : index
    %c0_88 = arith.constant 0 : index
    %304 = vector.load %arg10[%c0_87, %c0_88] : memref<32x128xf32, #tpu.memory_space<vmem>>, vector<32x128xf32>
    %cst_89 = arith.constant dense<0.000000e+00> : vector<1x128xf32>
    %305 = tpu.matmul %287, %304, %cst_89 {dimension_numbers = #tpu.dot_dimension_numbers<[1], [0], [0], [1], [0, 0, 1, 1], [], []>} : vector<1x32xf32>, vector<32x128xf32>, vector<1x128xf32> -> vector<1x128xf32>
    %306 = arith.addf %303, %305 : vector<1x128xf32>
    %307 = arith.negf %306 : vector<1x128xf32>
    %308 = math.exp %307 : vector<1x128xf32>
    %cst_90 = arith.constant 1.000000e+00 : f32
    %309 = vector.broadcast %cst_90 : f32 to vector<1x128xf32>
    %310 = arith.addf %309, %308 : vector<1x128xf32>
    %311 = arith.divf %309, %310 : vector<1x128xf32>
    %312 = math.tanh %306 : vector<1x128xf32>
    %313 = vector.extract_strided_slice %311 {offsets = [0, 0], sizes = [1, 32], strides = [1, 1]} : vector<1x128xf32> to vector<1x32xf32>
    %314 = vector.extract_strided_slice %311 {offsets = [0, 32], sizes = [1, 32], strides = [1, 1]} : vector<1x128xf32> to vector<1x32xf32>
    %315 = vector.extract_strided_slice %312 {offsets = [0, 64], sizes = [1, 32], strides = [1, 1]} : vector<1x128xf32> to vector<1x32xf32>
    %316 = vector.extract_strided_slice %311 {offsets = [0, 96], sizes = [1, 32], strides = [1, 1]} : vector<1x128xf32> to vector<1x32xf32>
    %317 = arith.mulf %314, %285 : vector<1x32xf32>
    %318 = arith.mulf %313, %315 : vector<1x32xf32>
    %319 = arith.addf %317, %318 : vector<1x32xf32>
    %320 = math.tanh %319 : vector<1x32xf32>
    %321 = arith.mulf %316, %320 : vector<1x32xf32>
    %c0_91 = arith.constant 0 : index
    %c0_92 = arith.constant 0 : index
    %322 = vector.load %arg11[%c0_91, %c0_92] : memref<32x8xf32, #tpu.memory_space<vmem>>, vector<32x8xf32>
    %cst_93 = arith.constant dense<0.000000e+00> : vector<1x8xf32>
    %323 = tpu.matmul %321, %322, %cst_93 {dimension_numbers = #tpu.dot_dimension_numbers<[1], [0], [0], [1], [0, 0, 1, 1], [], []>} : vector<1x32xf32>, vector<32x8xf32>, vector<1x8xf32> -> vector<1x8xf32>
    %c0_94 = arith.constant 0 : index
    %c0_95 = arith.constant 0 : index
    %324 = vector.load %arg12[%c0_94, %c0_95] : memref<1x8xf32, #tpu.memory_space<vmem>>, vector<1x8xf32>
    %325 = arith.addf %323, %324 : vector<1x8xf32>
    %cst_96 = arith.constant dense<0xFF800000> : vector<1xf32>
    %326 = vector.multi_reduction <maximumf>, %325, %cst_96 [1] : vector<1x8xf32> to vector<1xf32>
    %327 = vector.shape_cast %326 : vector<1xf32> to vector<1x1xf32>
    %328 = vector.broadcast %327 : vector<1x1xf32> to vector<1x8xf32>
    %329 = arith.subf %325, %328 : vector<1x8xf32>
    %330 = math.exp %329 : vector<1x8xf32>
    %cst_97 = arith.constant dense<0.000000e+00> : vector<1xf32>
    %331 = vector.multi_reduction <add>, %330, %cst_97 [1] : vector<1x8xf32> to vector<1xf32>
    %332 = vector.shape_cast %331 : vector<1xf32> to vector<1x1xf32>
    %333 = math.log %332 : vector<1x1xf32>
    %334 = vector.broadcast %333 : vector<1x1xf32> to vector<1x8xf32>
    %335 = arith.subf %329, %334 : vector<1x8xf32>
    %c2 = arith.constant 2 : index
    %c0_98 = arith.constant 0 : index
    %336 = vector.load %arg13[%c2, %c0_98] : memref<5x8xf32, #tpu.memory_space<vmem>>, vector<1x8xf32>
    tpu.vector_store %arg13[%c2, %c0_98], %335 {strides = array<i32>} : memref<5x8xf32, #tpu.memory_space<vmem>>, vector<1x8xf32>,
    %337 = vector.extract_strided_slice %232 {offsets = [3, 0], sizes = [1, 128], strides = [1, 1]} : vector<8x128xf32> to vector<1x128xf32>
    %c0_99 = arith.constant 0 : index
    %c0_100 = arith.constant 0 : index
    %338 = vector.load %arg10[%c0_99, %c0_100] : memref<32x128xf32, #tpu.memory_space<vmem>>, vector<32x128xf32>
    %cst_101 = arith.constant dense<0.000000e+00> : vector<1x128xf32>
    %339 = tpu.matmul %321, %338, %cst_101 {dimension_numbers = #tpu.dot_dimension_numbers<[1], [0], [0], [1], [0, 0, 1, 1], [], []>} : vector<1x32xf32>, vector<32x128xf32>, vector<1x128xf32> -> vector<1x128xf32>
    %340 = arith.addf %337, %339 : vector<1x128xf32>
    %341 = arith.negf %340 : vector<1x128xf32>
    %342 = math.exp %341 : vector<1x128xf32>
    %cst_102 = arith.constant 1.000000e+00 : f32
    %343 = vector.broadcast %cst_102 : f32 to vector<1x128xf32>
    %344 = arith.addf %343, %342 : vector<1x128xf32>
    %345 = arith.divf %343, %344 : vector<1x128xf32>
    %346 = math.tanh %340 : vector<1x128xf32>
    %347 = vector.extract_strided_slice %345 {offsets = [0, 0], sizes = [1, 32], strides = [1, 1]} : vector<1x128xf32> to vector<1x32xf32>
    %348 = vector.extract_strided_slice %345 {offsets = [0, 32], sizes = [1, 32], strides = [1, 1]} : vector<1x128xf32> to vector<1x32xf32>
    %349 = vector.extract_strided_slice %346 {offsets = [0, 64], sizes = [1, 32], strides = [1, 1]} : vector<1x128xf32> to vector<1x32xf32>
    %350 = vector.extract_strided_slice %345 {offsets = [0, 96], sizes = [1, 32], strides = [1, 1]} : vector<1x128xf32> to vector<1x32xf32>
    %351 = arith.mulf %348, %319 : vector<1x32xf32>
    %352 = arith.mulf %347, %349 : vector<1x32xf32>
    %353 = arith.addf %351, %352 : vector<1x32xf32>
    %354 = math.tanh %353 : vector<1x32xf32>
    %355 = arith.mulf %350, %354 : vector<1x32xf32>
    %c0_103 = arith.constant 0 : index
    %c0_104 = arith.constant 0 : index
    %356 = vector.load %arg11[%c0_103, %c0_104] : memref<32x8xf32, #tpu.memory_space<vmem>>, vector<32x8xf32>
    %cst_105 = arith.constant dense<0.000000e+00> : vector<1x8xf32>
    %357 = tpu.matmul %355, %356, %cst_105 {dimension_numbers = #tpu.dot_dimension_numbers<[1], [0], [0], [1], [0, 0, 1, 1], [], []>} : vector<1x32xf32>, vector<32x8xf32>, vector<1x8xf32> -> vector<1x8xf32>
    %c0_106 = arith.constant 0 : index
    %c0_107 = arith.constant 0 : index
    %358 = vector.load %arg12[%c0_106, %c0_107] : memref<1x8xf32, #tpu.memory_space<vmem>>, vector<1x8xf32>
    %359 = arith.addf %357, %358 : vector<1x8xf32>
    %cst_108 = arith.constant dense<0xFF800000> : vector<1xf32>
    %360 = vector.multi_reduction <maximumf>, %359, %cst_108 [1] : vector<1x8xf32> to vector<1xf32>
    %361 = vector.shape_cast %360 : vector<1xf32> to vector<1x1xf32>
    %362 = vector.broadcast %361 : vector<1x1xf32> to vector<1x8xf32>
    %363 = arith.subf %359, %362 : vector<1x8xf32>
    %364 = math.exp %363 : vector<1x8xf32>
    %cst_109 = arith.constant dense<0.000000e+00> : vector<1xf32>
    %365 = vector.multi_reduction <add>, %364, %cst_109 [1] : vector<1x8xf32> to vector<1xf32>
    %366 = vector.shape_cast %365 : vector<1xf32> to vector<1x1xf32>
    %367 = math.log %366 : vector<1x1xf32>
    %368 = vector.broadcast %367 : vector<1x1xf32> to vector<1x8xf32>
    %369 = arith.subf %363, %368 : vector<1x8xf32>
    %c3 = arith.constant 3 : index
    %c0_110 = arith.constant 0 : index
    %370 = vector.load %arg13[%c3, %c0_110] : memref<5x8xf32, #tpu.memory_space<vmem>>, vector<1x8xf32>
    tpu.vector_store %arg13[%c3, %c0_110], %369 {strides = array<i32>} : memref<5x8xf32, #tpu.memory_space<vmem>>, vector<1x8xf32>,
    %371 = vector.extract_strided_slice %232 {offsets = [4, 0], sizes = [1, 128], strides = [1, 1]} : vector<8x128xf32> to vector<1x128xf32>
    %c0_111 = arith.constant 0 : index
    %c0_112 = arith.constant 0 : index
    %372 = vector.load %arg10[%c0_111, %c0_112] : memref<32x128xf32, #tpu.memory_space<vmem>>, vector<32x128xf32>
    %cst_113 = arith.constant dense<0.000000e+00> : vector<1x128xf32>
    %373 = tpu.matmul %355, %372, %cst_113 {dimension_numbers = #tpu.dot_dimension_numbers<[1], [0], [0], [1], [0, 0, 1, 1], [], []>} : vector<1x32xf32>, vector<32x128xf32>, vector<1x128xf32> -> vector<1x128xf32>
    %374 = arith.addf %371, %373 : vector<1x128xf32>
    %375 = arith.negf %374 : vector<1x128xf32>
    %376 = math.exp %375 : vector<1x128xf32>
    %cst_114 = arith.constant 1.000000e+00 : f32
    %377 = vector.broadcast %cst_114 : f32 to vector<1x128xf32>
    %378 = arith.addf %377, %376 : vector<1x128xf32>
    %379 = arith.divf %377, %378 : vector<1x128xf32>
    %380 = math.tanh %374 : vector<1x128xf32>
    %381 = vector.extract_strided_slice %379 {offsets = [0, 0], sizes = [1, 32], strides = [1, 1]} : vector<1x128xf32> to vector<1x32xf32>
    %382 = vector.extract_strided_slice %379 {offsets = [0, 32], sizes = [1, 32], strides = [1, 1]} : vector<1x128xf32> to vector<1x32xf32>
    %383 = vector.extract_strided_slice %380 {offsets = [0, 64], sizes = [1, 32], strides = [1, 1]} : vector<1x128xf32> to vector<1x32xf32>
    %384 = vector.extract_strided_slice %379 {offsets = [0, 96], sizes = [1, 32], strides = [1, 1]} : vector<1x128xf32> to vector<1x32xf32>
    %385 = arith.mulf %382, %353 : vector<1x32xf32>
    %386 = arith.mulf %381, %383 : vector<1x32xf32>
    %387 = arith.addf %385, %386 : vector<1x32xf32>
    %388 = math.tanh %387 : vector<1x32xf32>
    %389 = arith.mulf %384, %388 : vector<1x32xf32>
    %c0_115 = arith.constant 0 : index
    %c0_116 = arith.constant 0 : index
    %390 = vector.load %arg11[%c0_115, %c0_116] : memref<32x8xf32, #tpu.memory_space<vmem>>, vector<32x8xf32>
    %cst_117 = arith.constant dense<0.000000e+00> : vector<1x8xf32>
    %391 = tpu.matmul %389, %390, %cst_117 {dimension_numbers = #tpu.dot_dimension_numbers<[1], [0], [0], [1], [0, 0, 1, 1], [], []>} : vector<1x32xf32>, vector<32x8xf32>, vector<1x8xf32> -> vector<1x8xf32>
    %c0_118 = arith.constant 0 : index
    %c0_119 = arith.constant 0 : index
    %392 = vector.load %arg12[%c0_118, %c0_119] : memref<1x8xf32, #tpu.memory_space<vmem>>, vector<1x8xf32>
    %393 = arith.addf %391, %392 : vector<1x8xf32>
    %cst_120 = arith.constant dense<0xFF800000> : vector<1xf32>
    %394 = vector.multi_reduction <maximumf>, %393, %cst_120 [1] : vector<1x8xf32> to vector<1xf32>
    %395 = vector.shape_cast %394 : vector<1xf32> to vector<1x1xf32>
    %396 = vector.broadcast %395 : vector<1x1xf32> to vector<1x8xf32>
    %397 = arith.subf %393, %396 : vector<1x8xf32>
    %398 = math.exp %397 : vector<1x8xf32>
    %cst_121 = arith.constant dense<0.000000e+00> : vector<1xf32>
    %399 = vector.multi_reduction <add>, %398, %cst_121 [1] : vector<1x8xf32> to vector<1xf32>
    %400 = vector.shape_cast %399 : vector<1xf32> to vector<1x1xf32>
    %401 = math.log %400 : vector<1x1xf32>
    %402 = vector.broadcast %401 : vector<1x1xf32> to vector<1x8xf32>
    %403 = arith.subf %397, %402 : vector<1x8xf32>
    %c4 = arith.constant 4 : index
    %c0_122 = arith.constant 0 : index
    %404 = vector.load %arg13[%c4, %c0_122] : memref<5x8xf32, #tpu.memory_space<vmem>>, vector<1x8xf32>
    tpu.vector_store %arg13[%c4, %c0_122], %403 {strides = array<i32>} : memref<5x8xf32, #tpu.memory_space<vmem>>, vector<1x8xf32>,
    return
  }
  func.func @transform_0(%arg0: i32) -> (i32, i32) {
    %c0_i32 = arith.constant 0 : i32
    %c0_i32_0 = arith.constant 0 : i32
    %c0_i32_1 = arith.constant 0 : i32
    return %c0_i32, %c0_i32_0 : i32, i32
  }
  func.func @transform_1(%arg0: i32) -> (i32, i32) {
    %c0_i32 = arith.constant 0 : i32
    %c0_i32_0 = arith.constant 0 : i32
    %c0_i32_1 = arith.constant 0 : i32
    return %c0_i32, %c0_i32_0 : i32, i32
  }
  func.func @transform_2(%arg0: i32) -> (i32, i32) {
    %c0_i32 = arith.constant 0 : i32
    %c0_i32_0 = arith.constant 0 : i32
    %c0_i32_1 = arith.constant 0 : i32
    return %c0_i32, %c0_i32_0 : i32, i32
  }
  func.func @transform_3(%arg0: i32) -> (i32, i32) {
    %c0_i32 = arith.constant 0 : i32
    %c0_i32_0 = arith.constant 0 : i32
    %c0_i32_1 = arith.constant 0 : i32
    return %c0_i32, %c0_i32_0 : i32, i32
  }
  func.func @transform_4(%arg0: i32) -> (i32, i32) {
    %c0_i32 = arith.constant 0 : i32
    %c0_i32_0 = arith.constant 0 : i32
    %c0_i32_1 = arith.constant 0 : i32
    return %c0_i32, %c0_i32_0 : i32, i32
  }
  func.func @transform_5(%arg0: i32) -> (i32, i32) {
    %c0_i32 = arith.constant 0 : i32
    %c0_i32_0 = arith.constant 0 : i32
    %c0_i32_1 = arith.constant 0 : i32
    return %c0_i32, %c0_i32_0 : i32, i32
  }
  func.func @transform_6(%arg0: i32) -> (i32, i32) {
    %c0_i32 = arith.constant 0 : i32
    %c0_i32_0 = arith.constant 0 : i32
    %c0_i32_1 = arith.constant 0 : i32
    return %c0_i32, %c0_i32_0 : i32, i32
  }
  func.func @transform_7(%arg0: i32) -> (i32, i32) {
    %c0_i32 = arith.constant 0 : i32
    %c0_i32_0 = arith.constant 0 : i32
    %c0_i32_1 = arith.constant 0 : i32
    return %c0_i32, %c0_i32_0 : i32, i32
  }
  func.func @transform_8(%arg0: i32) -> (i32, i32) {
    %c0_i32 = arith.constant 0 : i32
    %c0_i32_0 = arith.constant 0 : i32
    %c0_i32_1 = arith.constant 0 : i32
    return %c0_i32, %c0_i32_0 : i32, i32
  }
  func.func @transform_9(%arg0: i32) -> (i32, i32) {
    %c0_i32 = arith.constant 0 : i32
    %c0_i32_0 = arith.constant 0 : i32
    %c0_i32_1 = arith.constant 0 : i32
    return %c0_i32, %c0_i32_0 : i32, i32
  }
  func.func @transform_10(%arg0: i32) -> (i32, i32) {
    %c0_i32 = arith.constant 0 : i32
    %c0_i32_0 = arith.constant 0 : i32
    %c0_i32_1 = arith.constant 0 : i32
    return %c0_i32, %c0_i32_0 : i32, i32
  }
  func.func @transform_11(%arg0: i32) -> (i32, i32) {
    %c0_i32 = arith.constant 0 : i32
    %c0_i32_0 = arith.constant 0 : i32
    %c0_i32_1 = arith.constant 0 : i32
    return %c0_i32, %c0_i32_0 : i32, i32
  }
  func.func @transform_12(%arg0: i32) -> (i32, i32) {
    %c0_i32 = arith.constant 0 : i32
    %c0_i32_0 = arith.constant 0 : i32
    %c0_i32_1 = arith.constant 0 : i32
    return %c0_i32, %c0_i32_0 : i32, i32
  }
}

</mosaic_0001>

<llo_original>
// kernel: tpu_custom_call.1
$region0: #{tpu_custom_call.1}
  #allocation0 [shape = 'u32[]', space=smem, size = 0x4, offset = 0x4, fixed_abs, tag = 'smem constant byte address 0x4 - core index']
  #allocation1 [shape = 'u32[72,128]{1,0:T(1,128)}', space=vmem, size = 0x9000, scoped, tag = 'internal scratch']
  %s0 = inlined_call_operand.vmem [shape: f32[8,1], index: 0, kind: input, shape index: {}]
  %s1 = inlined_call_operand.vmem [shape: f32[8,8], index: 1, kind: input, shape index: {}]
  %s2 = inlined_call_operand.vmem [shape: f32[48,6], index: 2, kind: input, shape index: {}]
  %s3 = inlined_call_operand.vmem [shape: f32[6,64], index: 3, kind: input, shape index: {}]
  %s4 = inlined_call_operand.vmem [shape: f32[16,64], index: 4, kind: input, shape index: {}]
  %s5 = inlined_call_operand.vmem [shape: f32[1,64], index: 5, kind: input, shape index: {}]
  %s6 = inlined_call_operand.vmem [shape: f32[8,128], index: 6, kind: input, shape index: {}]
  %s7 = inlined_call_operand.vmem [shape: f32[16,128], index: 7, kind: input, shape index: {}]
  %s8 = inlined_call_operand.vmem [shape: f32[1,128], index: 8, kind: input, shape index: {}]
  %s9 = inlined_call_operand.vmem [shape: f32[32,128], index: 9, kind: input, shape index: {}]
  %s10 = inlined_call_operand.vmem [shape: f32[32,8], index: 10, kind: input, shape index: {}]
  %s11 = inlined_call_operand.vmem [shape: f32[1,8], index: 11, kind: input, shape index: {}]
  %s12 = inlined_call_operand.hbm [shape: f32[5,8], index: 12, kind: output, shape index: {}]
  %s13 = sld [smem:[#allocation0]]
  $region58: #{tpu_custom_call.1} parent=0
    _
  %s15 = ssub.s32 1, %s13
  %s16 = scalar_select 0, %s15, %s13
  $region1: #{tpu_custom_call.1} parent=0
    #allocation2 [shape = 'u8[4096]{0}', space=vmem, size = 0x1000, scoped, tag = 'output window, operand 0, single buffered']
    #allocation3 [shape = 's32[1]{0}', space=sflag, size = 0x4, scoped, tag = 'scoped memory for tpu_custom_call.1']
    %17 = vsyncpa [#allocation3], 0
    // Predicated region
    $region2: #{tpu_custom_call.1} parent=1 // pred_check
      _
    $region3: #{tpu_custom_call.1} parent=1 // pred_check_branch
      %19 = sbr.rel (0) target = $region5
    $region4: #{tpu_custom_call.1} parent=1 // pred_region
      _
    $region5: #{tpu_custom_call.1} parent=1 // pred_fallthru
      _
    // Predicated region
    $region6: #{tpu_custom_call.1} parent=1 // pred_check
      _
    $region7: #{tpu_custom_call.1} parent=1 // pred_check_branch
      %21 = sbr.rel (0) target = $region9
    $region8: #{tpu_custom_call.1} parent=1 // pred_region
      _
    $region9: #{tpu_custom_call.1} parent=1 // pred_fallthru
      _
    // Predicated region
    $region10: #{tpu_custom_call.1} parent=1 // pred_check
      _
    $region11: #{tpu_custom_call.1} parent=1 // pred_check_branch
      %23 = sbr.rel (0) target = $region13
    $region12: #{tpu_custom_call.1} parent=1 // pred_region
      _
    $region13: #{tpu_custom_call.1} parent=1 // pred_fallthru
      _
    // Predicated region
    $region14: #{tpu_custom_call.1} parent=1 // pred_check
      _
    $region15: #{tpu_custom_call.1} parent=1 // pred_check_branch
      %25 = sbr.rel (0) target = $region17
    $region16: #{tpu_custom_call.1} parent=1 // pred_region
      _
    $region17: #{tpu_custom_call.1} parent=1 // pred_fallthru
      _
    // Predicated region
    $region18: #{tpu_custom_call.1} parent=1 // pred_check
      _
    $region19: #{tpu_custom_call.1} parent=1 // pred_check_branch
      %27 = sbr.rel (0) target = $region21
    $region20: #{tpu_custom_call.1} parent=1 // pred_region
      _
    $region21: #{tpu_custom_call.1} parent=1 // pred_fallthru
      _
    // Predicated region
    $region22: #{tpu_custom_call.1} parent=1 // pred_check
      _
    $region23: #{tpu_custom_call.1} parent=1 // pred_check_branch
      %29 = sbr.rel (0) target = $region25
    $region24: #{tpu_custom_call.1} parent=1 // pred_region
      _
    $region25: #{tpu_custom_call.1} parent=1 // pred_fallthru
      _
    // Predicated region
    $region26: #{tpu_custom_call.1} parent=1 // pred_check
      _
    $region27: #{tpu_custom_call.1} parent=1 // pred_check_branch
      %31 = sbr.rel (0) target = $region29
    $region28: #{tpu_custom_call.1} parent=1 // pred_region
      _
    $region29: #{tpu_custom_call.1} parent=1 // pred_fallthru
      _
    // Predicated region
    $region30: #{tpu_custom_call.1} parent=1 // pred_check
      _
    $region31: #{tpu_custom_call.1} parent=1 // pred_check_branch
      %33 = sbr.rel (0) target = $region33
    $region32: #{tpu_custom_call.1} parent=1 // pred_region
      _
    $region33: #{tpu_custom_call.1} parent=1 // pred_fallthru
      _
    // Predicated region
    $region34: #{tpu_custom_call.1} parent=1 // pred_check
      _
    $region35: #{tpu_custom_call.1} parent=1 // pred_check_branch
      %35 = sbr.rel (0) target = $region37
    $region36: #{tpu_custom_call.1} parent=1 // pred_region
      _
    $region37: #{tpu_custom_call.1} parent=1 // pred_fallthru
      _
    // Predicated region
    $region38: #{tpu_custom_call.1} parent=1 // pred_check
      _
    $region39: #{tpu_custom_call.1} parent=1 // pred_check_branch
      %37 = sbr.rel (0) target = $region41
    $region40: #{tpu_custom_call.1} parent=1 // pred_region
      _
    $region41: #{tpu_custom_call.1} parent=1 // pred_fallthru
      _
    // Predicated region
    $region42: #{tpu_custom_call.1} parent=1 // pred_check
      _
    $region43: #{tpu_custom_call.1} parent=1 // pred_check_branch
      %39 = sbr.rel (0) target = $region45
    $region44: #{tpu_custom_call.1} parent=1 // pred_region
      _
    $region45: #{tpu_custom_call.1} parent=1 // pred_fallthru
      _
    // Predicated region
    $region46: #{tpu_custom_call.1} parent=1 // pred_check
      _
    $region47: #{tpu_custom_call.1} parent=1 // pred_check_branch
      %41 = sbr.rel (0) target = $region49
    $region48: #{tpu_custom_call.1} parent=1 // pred_region
      _
    $region49: #{tpu_custom_call.1} parent=1 // pred_fallthru
      _
    %v42 = vld [vmem:[%s2] sm:$0xff]
    %v43 = vld [vmem:[%s2 + $0x8] sm:$0xff]
    %v44 = vld [vmem:[%s2 + $0x10] sm:$0xff]
    %v45 = vld [vmem:[%s2 + $0x18] sm:$0xff]
    %v46 = vld [vmem:[%s2 + $0x20] sm:$0xff]
    %v47 = vld [vmem:[%s2 + $0x28] sm:$0xff]
    %v48 = vld [vmem:[%s3] sm:$0x3f]
    %v49 = vld [vmem:[%s5] sm:$0x1]
    %v51 = vperm.slane %v49, 0
    %vm53 = vcmask 48128
    %v55 = vsel %vm53, %v42, 0
    %v58 = vsel %vm53, %v43, 0
    %v61 = vsel %vm53, %v44, 0
    %v64 = vsel %vm53, %v45, 0
    %v67 = vsel %vm53, %v46, 0
    %v70 = vsel %vm53, %v47, 0
    %vm72 = vcmask 1045504
    %v74 = vsel %vm72, %v48, 0
    %76 = vmatpush.msra.mxu0 0.0
    %77 = vmatpush.msra.mxu0 0.0
    %78 = vmatpush.msra.mxu0 0.0
    %79 = vmatpush.msra.mxu0 0.0
    %80 = vmatpush.msra.mxu0 0.0
    %81 = vmatpush.msra.mxu0 0.0
    %82 = vmatpush.msra.mxu0 0.0
    %83 = vmatpush.msra.mxu0 0.0
    %84 = vmatpush.msra.mxu0 0.0
    %85 = vmatpush.msra.mxu0 0.0
    %86 = vmatpush.msra.mxu0 0.0
    %87 = vmatpush.msra.mxu0 0.0
    %88 = vmatpush.msra.mxu0 0.0
    %89 = vmatpush.msra.mxu0 0.0
    %90 = vmatpush.msra.mxu0 0.0
    %91 = vmatpush.msra.mxu0 %v74
    %92 = vmatmul.f32.gmra.mxu0 %v55
    %v93 = vpop.f32.mrf.mxu0
    %v94 = vadd.f32 %v51, %v93
    %95 = vmatmul.f32.gmra.mxu0 %v58
    %v96 = vpop.f32.mrf.mxu0
    %v97 = vadd.f32 %v51, %v96
    %98 = vmatmul.f32.gmra.mxu0 %v61
    %v99 = vpop.f32.mrf.mxu0
    %v100 = vadd.f32 %v51, %v99
    %101 = vmatmul.f32.gmra.mxu0 %v64
    %v102 = vpop.f32.mrf.mxu0
    %v103 = vadd.f32 %v51, %v102
    %104 = vmatmul.f32.gmra.mxu0 %v67
    %v105 = vpop.f32.mrf.mxu0
    %v106 = vadd.f32 %v51, %v105
    %107 = vmatmul.f32.gmra.mxu0 %v70
    %v108 = vpop.f32.mrf.mxu0
    %v109 = vadd.f32 %v51, %v108
    %110 = vdwg.mxu0
    %v111 = vld [vmem:[%s0] sm:$0xff]
    %v112 = vld [vmem:[%s4] sm:$0xff]
    %v113 = vld [vmem:[%s4 + $0x8] sm:$0xff]
    %vm114 = vcmask 130048
    %v116 = vsel %vm114, 0.0, 0
    %118 = vmatpush.msra.mxu0 0.0
    %119 = vmatpush.msra.mxu0 0.0
    %120 = vmatpush.msra.mxu0 0.0
    %121 = vmatpush.msra.mxu0 0.0
    %122 = vmatpush.msra.mxu0 0.0
    %123 = vmatpush.msra.mxu0 0.0
    %124 = vmatpush.msra.mxu0 0.0
    %125 = vmatpush.msra.mxu0 0.0
    %126 = vmatpush.msra.mxu0 0.0
    %127 = vmatpush.msra.mxu0 0.0
    %128 = vmatpush.msra.mxu0 0.0
    %129 = vmatpush.msra.mxu0 0.0
    %130 = vmatpush.msra.mxu0 0.0
    %131 = vmatpush.msra.mxu0 0.0
    %132 = vmatpush.msra.mxu0 %v113
    %133 = vmatpush.msra.mxu0 %v112
    %134 = vmatmul.f32.gmra.mxu0 %v116
    %v135 = vpop.f32.mrf.mxu0
    %v136 = vadd.f32 0.0, %v135
    %137 = vdwg.mxu0
    %v138 = vadd.f32 %v94, %v136
    %v139 = vxor.u32 %v138, 2147483648
    %v140 = vmul.f32 %v139, 1.442695
    %v141 = vpow.pop %v140
    %v142 = vadd.f32 %v141, 1.0
    %v143 = vrcp.pop %v142
    %v144 = vmul.f32 %v142, %v143
    %v145 = vsub.f32 1.0, %v144
    %v146 = vmul.f32 %v143, %v145
    %v147 = vadd.f32 %v143, %v146
    %vm148 = vweird.f32 %v142
    %vm149 = vweird.f32 %v143
    %vm150 = vmor %vm148, %vm149
    %v151 = vsel %vm150, %v143, %v147
    %v152 = vand.u32 2147483647, %v142
    %vm153 = vcmp.eq.f32.partialorder %v152, 8.507059e+37
    %v154 = vand.u32 %v142, 2147483648
    %v155 = vor.u32 1.1754944e-38, %v154
    %v156 = vsel %vm153, %v155, %v151
    %v157 = vmul.f32 1.0, %v156
    %v158 = vtanh.pop %v138
    %v159 = vmul.f32 %v157, 0.0
    %161 = vrot.lane.b32.xlu0 %v158, 96
    %v162 = vpop.permute.xlu0 %161
    %v164 = vmul.f32 %v157, %v162
    %166 = vrot.lane.b32.xlu0 %v164, 16
    %v167 = vpop.permute.xlu0 %166
    %v169 = vadd.f32 %v159, %v167
    %v170 = vtanh.pop %v169
    %172 = vrot.lane.b32.xlu0 %v170, 32
    %v173 = vpop.permute.xlu0 %172
    %v175 = vmul.f32 %v157, %v173
    %vm176 = vcmp.gt.f32.partialorder %v111, 0.0
    %v177 = vsel %vm176, 1, 0
    %v178 = vcvt.s32.f32 %v177
    %180 = vset.pattern.permute.xlu0 0
    %181 = vperm.xlu0 %180, %v178
    %v182 = vpop.permute.xlu0 %181
    %v184 = vmul.f32 %v182, %v175
    %v185 = vsub.f32 1.0, %v178
    %187 = vset.pattern.permute.xlu0 0
    %188 = vperm.xlu0 %187, %v185
    %v189 = vpop.permute.xlu0 %188
    %v191 = vmul.f32 %v189, 0.0
    %v192 = vadd.f32 %v184, %v191
    %v193 = vmul.f32 %v182, %v169
    %v194 = vadd.f32 %v193, %v191
    %196 = vrot.lane.b32.xlu0 %v192, 80
    %v197 = vpop.permute.xlu0 %196
    %v198 = vsel %vm114, %v197, 0
    %200 = vmatpush.msra.mxu0 0.0
    %201 = vmatpush.msra.mxu0 0.0
    %202 = vmatpush.msra.mxu0 0.0
    %203 = vmatpush.msra.mxu0 0.0
    %204 = vmatpush.msra.mxu0 0.0
    %205 = vmatpush.msra.mxu0 0.0
    %206 = vmatpush.msra.mxu0 0.0
    %207 = vmatpush.msra.mxu0 0.0
    %208 = vmatpush.msra.mxu0 0.0
    %209 = vmatpush.msra.mxu0 0.0
    %210 = vmatpush.msra.mxu0 0.0
    %211 = vmatpush.msra.mxu0 0.0
    %212 = vmatpush.msra.mxu0 0.0
    %213 = vmatpush.msra.mxu0 0.0
    %214 = vmatpush.msra.mxu0 %v113
    %215 = vmatpush.msra.mxu0 %v112
    %216 = vmatmul.f32.gmra.mxu0 %v198
    %v217 = vpop.f32.mrf.mxu0
    %v218 = vadd.f32 0.0, %v217
    %219 = vdwg.mxu0
    %v220 = vadd.f32 %v97, %v218
    %v221 = vxor.u32 %v220, 2147483648
    %v222 = vmul.f32 %v221, 1.442695
    %v223 = vpow.pop %v222
    %v224 = vadd.f32 %v223, 1.0
    %v225 = vrcp.pop %v224
    %v226 = vmul.f32 %v224, %v225
    %v227 = vsub.f32 1.0, %v226
    %v228 = vmul.f32 %v225, %v227
    %v229 = vadd.f32 %v225, %v228
    %vm230 = vweird.f32 %v224
    %vm231 = vweird.f32 %v225
    %vm232 = vmor %vm230, %vm231
    %v233 = vsel %vm232, %v225, %v229
    %v234 = vand.u32 2147483647, %v224
    %vm235 = vcmp.eq.f32.partialorder %v234, 8.507059e+37
    %v236 = vand.u32 %v224, 2147483648
    %v237 = vor.u32 1.1754944e-38, %v236
    %v238 = vsel %vm235, %v237, %v233
    %v239 = vmul.f32 1.0, %v238
    %v240 = vtanh.pop %v220
    %v241 = vmul.f32 %v239, %v194
    %243 = vrot.lane.b32.xlu0 %v240, 96
    %v244 = vpop.permute.xlu0 %243
    %v246 = vmul.f32 %v239, %v244
    %248 = vrot.lane.b32.xlu0 %v246, 16
    %v249 = vpop.permute.xlu0 %248
    %v251 = vadd.f32 %v241, %v249
    %v252 = vtanh.pop %v251
    %254 = vrot.lane.b32.xlu0 %v252, 32
    %v255 = vpop.permute.xlu0 %254
    %v257 = vmul.f32 %v239, %v255
    %vm258 = vcmp.gt.f32.partialorder %v111, 1.0
    %v259 = vsel %vm258, 1, 0
    %v260 = vcvt.s32.f32 %v259
    %262 = vset.pattern.permute.xlu0 0
    %263 = vperm.xlu0 %262, %v260
    %v264 = vpop.permute.xlu0 %263
    %v266 = vmul.f32 %v264, %v257
    %v267 = vsub.f32 1.0, %v260
    %269 = vset.pattern.permute.xlu0 0
    %270 = vperm.xlu0 %269, %v267
    %v271 = vpop.permute.xlu0 %270
    %v273 = vmul.f32 %v271, %v192
    %v274 = vadd.f32 %v266, %v273
    %v275 = vmul.f32 %v264, %v251
    %v276 = vmul.f32 %v271, %v194
    %v277 = vadd.f32 %v275, %v276
    %279 = vrot.lane.b32.xlu0 %v274, 80
    %v280 = vpop.permute.xlu0 %279
    %v281 = vsel %vm114, %v280, 0
    %283 = vmatpush.msra.mxu0 0.0
    %284 = vmatpush.msra.mxu0 0.0
    %285 = vmatpush.msra.mxu0 0.0
    %286 = vmatpush.msra.mxu0 0.0
    %287 = vmatpush.msra.mxu0 0.0
    %288 = vmatpush.msra.mxu0 0.0
    %289 = vmatpush.msra.mxu0 0.0
    %290 = vmatpush.msra.mxu0 0.0
    %291 = vmatpush.msra.mxu0 0.0
    %292 = vmatpush.msra.mxu0 0.0
    %293 = vmatpush.msra.mxu0 0.0
    %294 = vmatpush.msra.mxu0 0.0
    %295 = vmatpush.msra.mxu0 0.0
    %296 = vmatpush.msra.mxu0 0.0
    %297 = vmatpush.msra.mxu0 %v113
    %298 = vmatpush.msra.mxu0 %v112
    %299 = vmatmul.f32.gmra.mxu0 %v281
    %v300 = vpop.f32.mrf.mxu0
    %v301 = vadd.f32 0.0, %v300
    %302 = vdwg.mxu0
    %v303 = vadd.f32 %v100, %v301
    %v304 = vxor.u32 %v303, 2147483648
    %v305 = vmul.f32 %v304, 1.442695
    %v306 = vpow.pop %v305
    %v307 = vadd.f32 %v306, 1.0
    %v308 = vrcp.pop %v307
    %v309 = vmul.f32 %v307, %v308
    %v310 = vsub.f32 1.0, %v309
    %v311 = vmul.f32 %v308, %v310
    %v312 = vadd.f32 %v308, %v311
    %vm313 = vweird.f32 %v307
    %vm314 = vweird.f32 %v308
    %vm315 = vmor %vm313, %vm314
    %v316 = vsel %vm315, %v308, %v312
    %v317 = vand.u32 2147483647, %v307
    %vm318 = vcmp.eq.f32.partialorder %v317, 8.507059e+37
    %v319 = vand.u32 %v307, 2147483648
    %v320 = vor.u32 1.1754944e-38, %v319
    %v321 = vsel %vm318, %v320, %v316
    %v322 = vmul.f32 1.0, %v321
    %v323 = vtanh.pop %v303
    %v324 = vmul.f32 %v322, %v277
    %326 = vrot.lane.b32.xlu0 %v323, 96
    %v327 = vpop.permute.xlu0 %326
    %v329 = vmul.f32 %v322, %v327
    %331 = vrot.lane.b32.xlu0 %v329, 16
    %v332 = vpop.permute.xlu0 %331
    %v334 = vadd.f32 %v324, %v332
    %v335 = vtanh.pop %v334
    %337 = vrot.lane.b32.xlu0 %v335, 32
    %v338 = vpop.permute.xlu0 %337
    %v340 = vmul.f32 %v322, %v338
    %vm341 = vcmp.gt.f32.partialorder %v111, 2.0
    %v342 = vsel %vm341, 1, 0
    %v343 = vcvt.s32.f32 %v342
    %345 = vset.pattern.permute.xlu0 0
    %346 = vperm.xlu0 %345, %v343
    %v347 = vpop.permute.xlu0 %346
    %v349 = vmul.f32 %v347, %v340
    %v350 = vsub.f32 1.0, %v343
    %352 = vset.pattern.permute.xlu0 0
    %353 = vperm.xlu0 %352, %v350
    %v354 = vpop.permute.xlu0 %353
    %v356 = vmul.f32 %v354, %v274
    %v357 = vadd.f32 %v349, %v356
    %v358 = vmul.f32 %v347, %v334
    %v359 = vmul.f32 %v354, %v277
    %v360 = vadd.f32 %v358, %v359
    %362 = vrot.lane.b32.xlu0 %v357, 80
    %v363 = vpop.permute.xlu0 %362
    %v364 = vsel %vm114, %v363, 0
    %366 = vmatpush.msra.mxu0 0.0
    %367 = vmatpush.msra.mxu0 0.0
    %368 = vmatpush.msra.mxu0 0.0
    %369 = vmatpush.msra.mxu0 0.0
    %370 = vmatpush.msra.mxu0 0.0
    %371 = vmatpush.msra.mxu0 0.0
    %372 = vmatpush.msra.mxu0 0.0
    %373 = vmatpush.msra.mxu0 0.0
    %374 = vmatpush.msra.mxu0 0.0
    %375 = vmatpush.msra.mxu0 0.0
    %376 = vmatpush.msra.mxu0 0.0
    %377 = vmatpush.msra.mxu0 0.0
    %378 = vmatpush.msra.mxu0 0.0
    %379 = vmatpush.msra.mxu0 0.0
    %380 = vmatpush.msra.mxu0 %v113
    %381 = vmatpush.msra.mxu0 %v112
    %382 = vmatmul.f32.gmra.mxu0 %v364
    %v383 = vpop.f32.mrf.mxu0
    %v384 = vadd.f32 0.0, %v383
    %385 = vdwg.mxu0
    %v386 = vadd.f32 %v103, %v384
    %v387 = vxor.u32 %v386, 2147483648
    %v388 = vmul.f32 %v387, 1.442695
    %v389 = vpow.pop %v388
    %v390 = vadd.f32 %v389, 1.0
    %v391 = vrcp.pop %v390
    %v392 = vmul.f32 %v390, %v391
    %v393 = vsub.f32 1.0, %v392
    %v394 = vmul.f32 %v391, %v393
    %v395 = vadd.f32 %v391, %v394
    %vm396 = vweird.f32 %v390
    %vm397 = vweird.f32 %v391
    %vm398 = vmor %vm396, %vm397
    %v399 = vsel %vm398, %v391, %v395
    %v400 = vand.u32 2147483647, %v390
    %vm401 = vcmp.eq.f32.partialorder %v400, 8.507059e+37
    %v402 = vand.u32 %v390, 2147483648
    %v403 = vor.u32 1.1754944e-38, %v402
    %v404 = vsel %vm401, %v403, %v399
    %v405 = vmul.f32 1.0, %v404
    %v406 = vtanh.pop %v386
    %v407 = vmul.f32 %v405, %v360
    %409 = vrot.lane.b32.xlu0 %v406, 96
    %v410 = vpop.permute.xlu0 %409
    %v412 = vmul.f32 %v405, %v410
    %414 = vrot.lane.b32.xlu0 %v412, 16
    %v415 = vpop.permute.xlu0 %414
    %v417 = vadd.f32 %v407, %v415
    %v418 = vtanh.pop %v417
    %420 = vrot.lane.b32.xlu0 %v418, 32
    %v421 = vpop.permute.xlu0 %420
    %v423 = vmul.f32 %v405, %v421
    %vm424 = vcmp.gt.f32.partialorder %v111, 3.0
    %v425 = vsel %vm424, 1, 0
    %v426 = vcvt.s32.f32 %v425
    %428 = vset.pattern.permute.xlu0 0
    %429 = vperm.xlu0 %428, %v426
    %v430 = vpop.permute.xlu0 %429
    %v432 = vmul.f32 %v430, %v423
    %v433 = vsub.f32 1.0, %v426
    %435 = vset.pattern.permute.xlu0 0
    %436 = vperm.xlu0 %435, %v433
    %v437 = vpop.permute.xlu0 %436
    %v439 = vmul.f32 %v437, %v357
    %v440 = vadd.f32 %v432, %v439
    %v441 = vmul.f32 %v430, %v417
    %v442 = vmul.f32 %v437, %v360
    %v443 = vadd.f32 %v441, %v442
    %445 = vrot.lane.b32.xlu0 %v440, 80
    %v446 = vpop.permute.xlu0 %445
    %v447 = vsel %vm114, %v446, 0
    %449 = vmatpush.msra.mxu0 0.0
    %450 = vmatpush.msra.mxu0 0.0
    %451 = vmatpush.msra.mxu0 0.0
    %452 = vmatpush.msra.mxu0 0.0
    %453 = vmatpush.msra.mxu0 0.0
    %454 = vmatpush.msra.mxu0 0.0
    %455 = vmatpush.msra.mxu0 0.0
    %456 = vmatpush.msra.mxu0 0.0
    %457 = vmatpush.msra.mxu0 0.0
    %458 = vmatpush.msra.mxu0 0.0
    %459 = vmatpush.msra.mxu0 0.0
    %460 = vmatpush.msra.mxu0 0.0
    %461 = vmatpush.msra.mxu0 0.0
    %462 = vmatpush.msra.mxu0 0.0
    %463 = vmatpush.msra.mxu0 %v113
    %464 = vmatpush.msra.mxu0 %v112
    %465 = vmatmul.f32.gmra.mxu0 %v447
    %v466 = vpop.f32.mrf.mxu0
    %v467 = vadd.f32 0.0, %v466
    %468 = vdwg.mxu0
    %v469 = vadd.f32 %v106, %v467
    %v470 = vxor.u32 %v469, 2147483648
    %v471 = vmul.f32 %v470, 1.442695
    %v472 = vpow.pop %v471
    %v473 = vadd.f32 %v472, 1.0
    %v474 = vrcp.pop %v473
    %v475 = vmul.f32 %v473, %v474
    %v476 = vsub.f32 1.0, %v475
    %v477 = vmul.f32 %v474, %v476
    %v478 = vadd.f32 %v474, %v477
    %vm479 = vweird.f32 %v473
    %vm480 = vweird.f32 %v474
    %vm481 = vmor %vm479, %vm480
    %v482 = vsel %vm481, %v474, %v478
    %v483 = vand.u32 2147483647, %v473
    %vm484 = vcmp.eq.f32.partialorder %v483, 8.507059e+37
    %v485 = vand.u32 %v473, 2147483648
    %v486 = vor.u32 1.1754944e-38, %v485
    %v487 = vsel %vm484, %v486, %v482
    %v488 = vmul.f32 1.0, %v487
    %v489 = vtanh.pop %v469
    %v490 = vmul.f32 %v488, %v443
    %492 = vrot.lane.b32.xlu0 %v489, 96
    %v493 = vpop.permute.xlu0 %492
    %v495 = vmul.f32 %v488, %v493
    %497 = vrot.lane.b32.xlu0 %v495, 16
    %v498 = vpop.permute.xlu0 %497
    %v500 = vadd.f32 %v490, %v498
    %v501 = vtanh.pop %v500
    %503 = vrot.lane.b32.xlu0 %v501, 32
    %v504 = vpop.permute.xlu0 %503
    %v506 = vmul.f32 %v488, %v504
    %vm507 = vcmp.gt.f32.partialorder %v111, 4.0
    %v508 = vsel %vm507, 1, 0
    %v509 = vcvt.s32.f32 %v508
    %511 = vset.pattern.permute.xlu0 0
    %512 = vperm.xlu0 %511, %v509
    %v513 = vpop.permute.xlu0 %512
    %v515 = vmul.f32 %v513, %v506
    %v516 = vsub.f32 1.0, %v509
    %518 = vset.pattern.permute.xlu0 0
    %519 = vperm.xlu0 %518, %v516
    %v520 = vpop.permute.xlu0 %519
    %v522 = vmul.f32 %v520, %v440
    %v523 = vadd.f32 %v515, %v522
    %v524 = vmul.f32 %v513, %v500
    %v525 = vmul.f32 %v520, %v443
    %v526 = vadd.f32 %v524, %v525
    %528 = vrot.lane.b32.xlu0 %v523, 80
    %v529 = vpop.permute.xlu0 %528
    %v530 = vsel %vm114, %v529, 0
    %532 = vmatpush.msra.mxu0 0.0
    %533 = vmatpush.msra.mxu0 0.0
    %534 = vmatpush.msra.mxu0 0.0
    %535 = vmatpush.msra.mxu0 0.0
    %536 = vmatpush.msra.mxu0 0.0
    %537 = vmatpush.msra.mxu0 0.0
    %538 = vmatpush.msra.mxu0 0.0
    %539 = vmatpush.msra.mxu0 0.0
    %540 = vmatpush.msra.mxu0 0.0
    %541 = vmatpush.msra.mxu0 0.0
    %542 = vmatpush.msra.mxu0 0.0
    %543 = vmatpush.msra.mxu0 0.0
    %544 = vmatpush.msra.mxu0 0.0
    %545 = vmatpush.msra.mxu0 0.0
    %546 = vmatpush.msra.mxu0 %v113
    %547 = vmatpush.msra.mxu0 %v112
    %548 = vmatmul.f32.gmra.mxu0 %v530
    %v549 = vpop.f32.mrf.mxu0
    %v550 = vadd.f32 0.0, %v549
    %551 = vdwg.mxu0
    %v552 = vadd.f32 %v109, %v550
    %v553 = vxor.u32 %v552, 2147483648
    %v554 = vmul.f32 %v553, 1.442695
    %v555 = vpow.pop %v554
    %v556 = vadd.f32 %v555, 1.0
    %v557 = vrcp.pop %v556
    %v558 = vmul.f32 %v556, %v557
    %v559 = vsub.f32 1.0, %v558
    %v560 = vmul.f32 %v557, %v559
    %v561 = vadd.f32 %v557, %v560
    %vm562 = vweird.f32 %v556
    %vm563 = vweird.f32 %v557
    %vm564 = vmor %vm562, %vm563
    %v565 = vsel %vm564, %v557, %v561
    %v566 = vand.u32 2147483647, %v556
    %vm567 = vcmp.eq.f32.partialorder %v566, 8.507059e+37
    %v568 = vand.u32 %v556, 2147483648
    %v569 = vor.u32 1.1754944e-38, %v568
    %v570 = vsel %vm567, %v569, %v565
    %v571 = vmul.f32 1.0, %v570
    %v572 = vtanh.pop %v552
    %v573 = vmul.f32 %v571, %v526
    %575 = vrot.lane.b32.xlu0 %v572, 96
    %v576 = vpop.permute.xlu0 %575
    %v578 = vmul.f32 %v571, %v576
    %580 = vrot.lane.b32.xlu0 %v578, 16
    %v581 = vpop.permute.xlu0 %580
    %v583 = vadd.f32 %v573, %v581
    %v584 = vtanh.pop %v583
    %586 = vrot.lane.b32.xlu0 %v584, 32
    %v587 = vpop.permute.xlu0 %586
    %v589 = vmul.f32 %v571, %v587
    %vm590 = vcmp.gt.f32.partialorder %v111, 5.0
    %v591 = vsel %vm590, 1, 0
    %v592 = vcvt.s32.f32 %v591
    %594 = vset.pattern.permute.xlu0 0
    %595 = vperm.xlu0 %594, %v592
    %v596 = vpop.permute.xlu0 %595
    %v598 = vmul.f32 %v596, %v589
    %v599 = vsub.f32 1.0, %v592
    %601 = vset.pattern.permute.xlu0 0
    %602 = vperm.xlu0 %601, %v599
    %v603 = vpop.permute.xlu0 %602
    %v605 = vmul.f32 %v603, %v523
    %v606 = vadd.f32 %v598, %v605
    %v607 = vld [vmem:[%s1] sm:$0xff]
    %v608 = vld [vmem:[%s6] sm:$0xff]
    %v609 = vld [vmem:[%s7] sm:$0xff]
    %v610 = vld [vmem:[%s7 + $0x8] sm:$0xff]
    %612 = vrot.lane.b32.xlu0 %v606, 80
    %v613 = vpop.permute.xlu0 %612
    %v614 = vsel %vm114, %v613, 0
    %616 = vmatpush.msra.mxu0 0.0
    %617 = vmatpush.msra.mxu0 0.0
    %618 = vmatpush.msra.mxu0 0.0
    %619 = vmatpush.msra.mxu0 0.0
    %620 = vmatpush.msra.mxu0 0.0
    %621 = vmatpush.msra.mxu0 0.0
    %622 = vmatpush.msra.mxu0 0.0
    %623 = vmatpush.msra.mxu0 0.0
    %624 = vmatpush.msra.mxu0 0.0
    %625 = vmatpush.msra.mxu0 0.0
    %626 = vmatpush.msra.mxu0 0.0
    %627 = vmatpush.msra.mxu0 0.0
    %628 = vmatpush.msra.mxu0 0.0
    %629 = vmatpush.msra.mxu0 0.0
    %630 = vmatpush.msra.mxu0 %v610
    %631 = vmatpush.msra.mxu0 %v609
    %632 = vmatmul.f32.gmra.mxu0 %v614
    %v633 = vpop.f32.mrf.mxu0
    %v634 = vadd.f32 0.0, %v633
    %635 = vdwg.mxu0
    %vm636 = vcmask 64512
    %v638 = vsel %vm636, %v607, 0
    %640 = vmatpush.msra.mxu0 0.0
    %641 = vmatpush.msra.mxu0 0.0
    %642 = vmatpush.msra.mxu0 0.0
    %643 = vmatpush.msra.mxu0 0.0
    %644 = vmatpush.msra.mxu0 0.0
    %645 = vmatpush.msra.mxu0 0.0
    %646 = vmatpush.msra.mxu0 0.0
    %647 = vmatpush.msra.mxu0 0.0
    %648 = vmatpush.msra.mxu0 0.0
    %649 = vmatpush.msra.mxu0 0.0
    %650 = vmatpush.msra.mxu0 0.0
    %651 = vmatpush.msra.mxu0 0.0
    %652 = vmatpush.msra.mxu0 0.0
    %653 = vmatpush.msra.mxu0 0.0
    %654 = vmatpush.msra.mxu0 0.0
    %655 = vmatpush.msra.mxu0 %v608
    %656 = vmatmul.f32.gmra.mxu0 %v638
    %v657 = vpop.f32.mrf.mxu0
    %v658 = vadd.f32 %v634, %v657
    %659 = vdwg.mxu0
    %v660 = vld [vmem:[%s8] sm:$0x1]
    %v662 = vperm.slane %v660, 0
    %v664 = vadd.f32 %v658, %v662
    %v665 = vld [vmem:[%s9] sm:$0xff]
    %v666 = vld [vmem:[%s9 + $0x8] sm:$0xff]
    %v667 = vld [vmem:[%s9 + $0x10] sm:$0xff]
    %v668 = vld [vmem:[%s9 + $0x18] sm:$0xff]
    %vm669 = vcmask 261120
    %v670 = vsel %vm669, 0.0, 0
    %672 = vmatpush.msra.mxu0 0.0
    %673 = vmatpush.msra.mxu0 0.0
    %674 = vmatpush.msra.mxu0 0.0
    %675 = vmatpush.msra.mxu0 0.0
    %676 = vmatpush.msra.mxu0 0.0
    %677 = vmatpush.msra.mxu0 0.0
    %678 = vmatpush.msra.mxu0 0.0
    %679 = vmatpush.msra.mxu0 0.0
    %680 = vmatpush.msra.mxu0 0.0
    %681 = vmatpush.msra.mxu0 0.0
    %682 = vmatpush.msra.mxu0 0.0
    %683 = vmatpush.msra.mxu0 0.0
    %684 = vmatpush.msra.mxu0 %v668
    %685 = vmatpush.msra.mxu0 %v667
    %686 = vmatpush.msra.mxu0 %v666
    %687 = vmatpush.msra.mxu0 %v665
    %688 = vmatmul.f32.gmra.mxu0 %v670
    %v689 = vpop.f32.mrf.mxu0
    %v690 = vadd.f32 0.0, %v689
    %691 = vdwg.mxu0
    %v692 = vadd.f32 %v664, %v690
    %v693 = vxor.u32 %v692, 2147483648
    %v694 = vmul.f32 %v693, 1.442695
    %v695 = vpow.pop %v694
    %v696 = vadd.f32 %v695, 1.0
    %v697 = vrcp.pop %v696
    %v698 = vmul.f32 %v696, %v697
    %v699 = vsub.f32 1.0, %v698
    %v700 = vmul.f32 %v697, %v699
    %v701 = vadd.f32 %v697, %v700
    %vm702 = vweird.f32 %v696
    %vm703 = vweird.f32 %v697
    %vm704 = vmor %vm702, %vm703
    %v705 = vsel %vm704, %v697, %v701
    %v706 = vand.u32 2147483647, %v696
    %vm707 = vcmp.eq.f32.partialorder %v706, 8.507059e+37
    %v708 = vand.u32 %v696, 2147483648
    %v709 = vor.u32 1.1754944e-38, %v708
    %v710 = vsel %vm707, %v709, %v705
    %v711 = vmul.f32 1.0, %v710
    %v712 = vtanh.pop %v692
    %v713 = vmul.f32 %v711, 0.0
    %715 = vrot.lane.b32.xlu0 %v712, 64
    %v716 = vpop.permute.xlu0 %715
    %v718 = vmul.f32 %v711, %v716
    %720 = vrot.lane.b32.xlu0 %v718, 32
    %v721 = vpop.permute.xlu0 %720
    %v723 = vadd.f32 %v713, %v721
    %v724 = vtanh.pop %v723
    %726 = vrot.lane.b32.xlu0 %v724, 64
    %v727 = vpop.permute.xlu0 %726
    %v729 = vmul.f32 %v711, %v727
    %v730 = vld [vmem:[%s10] sm:$0xff]
    %v731 = vld [vmem:[%s10 + $0x8] sm:$0xff]
    %v732 = vld [vmem:[%s10 + $0x10] sm:$0xff]
    %v733 = vld [vmem:[%s10 + $0x18] sm:$0xff]
    %v734 = vld [vmem:[%s11] sm:$0x1]
    %736 = vrot.lane.b32.xlu0 %v729, 32
    %v737 = vpop.permute.xlu0 %736
    %v738 = vsel %vm669, %v737, 0
    %740 = vmatpush.msra.mxu0 0.0
    %741 = vmatpush.msra.mxu0 0.0
    %742 = vmatpush.msra.mxu0 0.0
    %743 = vmatpush.msra.mxu0 0.0
    %744 = vmatpush.msra.mxu0 0.0
    %745 = vmatpush.msra.mxu0 0.0
    %746 = vmatpush.msra.mxu0 0.0
    %747 = vmatpush.msra.mxu0 0.0
    %748 = vmatpush.msra.mxu0 0.0
    %749 = vmatpush.msra.mxu0 0.0
    %750 = vmatpush.msra.mxu0 0.0
    %751 = vmatpush.msra.mxu0 0.0
    %752 = vmatpush.msra.mxu0 %v733
    %753 = vmatpush.msra.mxu0 %v732
    %754 = vmatpush.msra.mxu0 %v731
    %755 = vmatpush.msra.mxu0 %v730
    %756 = vmatmul.f32.gmra.mxu0 %v738
    %v757 = vpop.f32.mrf.mxu0
    %v758 = vadd.f32 %v734, %v757
    %759 = vdwg.mxu0
    %vm760 = vcmask 57344
    %v761 = vsel %vm760, %v758, -inf
    %762 = vmax.xlane.f32.xlu0 %v761
    %v763 = vpop.xlane.xlu0 %762
    %v764 = vsub.f32 %v758, %v763
    %v765 = vmul.f32 %v764, 1.442695
    %v766 = vpow.pop %v765
    %v767 = vsel %vm760, %v766, 0.0
    %768 = vadd.xlane.f32.xlu0 %v767
    %v769 = vpop.xlane.xlu0 %768
    %v770 = vlog2.pop %v769
    %v771 = vmul.f32 %v770, 0.6931472
    %v772 = vsub.f32 %v764, %v771
    %773 = vst.msk [vmem:[#allocation2] sm:$0x1] %vm760, %v772
    %v774 = vld [vmem:[%s9] sm:$0xff]
    %v775 = vld [vmem:[%s9 + $0x8] sm:$0xff]
    %v776 = vld [vmem:[%s9 + $0x10] sm:$0xff]
    %v777 = vld [vmem:[%s9 + $0x18] sm:$0xff]
    %778 = vmatpush.msra.mxu0 0.0
    %779 = vmatpush.msra.mxu0 0.0
    %780 = vmatpush.msra.mxu0 0.0
    %781 = vmatpush.msra.mxu0 0.0
    %782 = vmatpush.msra.mxu0 0.0
    %783 = vmatpush.msra.mxu0 0.0
    %784 = vmatpush.msra.mxu0 0.0
    %785 = vmatpush.msra.mxu0 0.0
    %786 = vmatpush.msra.mxu0 0.0
    %787 = vmatpush.msra.mxu0 0.0
    %788 = vmatpush.msra.mxu0 0.0
    %789 = vmatpush.msra.mxu0 0.0
    %790 = vmatpush.msra.mxu0 %v777
    %791 = vmatpush.msra.mxu0 %v776
    %792 = vmatpush.msra.mxu0 %v775
    %793 = vmatpush.msra.mxu0 %v774
    %794 = vmatmul.f32.gmra.mxu0 %v738
    %v795 = vpop.f32.mrf.mxu0
    %v796 = vadd.f32 0.0, %v795
    %797 = vdwg.mxu0
    %v799 = vrot.slane %v796, 7
    %v801 = vadd.f32 %v664, %v799
    %v802 = vxor.u32 %v801, 2147483648
    %v803 = vmul.f32 %v802, 1.442695
    %v804 = vpow.pop %v803
    %v805 = vadd.f32 %v804, 1.0
    %v806 = vrcp.pop %v805
    %v807 = vmul.f32 %v805, %v806
    %v808 = vsub.f32 1.0, %v807
    %v809 = vmul.f32 %v806, %v808
    %v810 = vadd.f32 %v806, %v809
    %vm811 = vweird.f32 %v805
    %vm812 = vweird.f32 %v806
    %vm813 = vmor %vm811, %vm812
    %v814 = vsel %vm813, %v806, %v810
    %v815 = vand.u32 2147483647, %v805
    %vm816 = vcmp.eq.f32.partialorder %v815, 8.507059e+37
    %v817 = vand.u32 %v805, 2147483648
    %v818 = vor.u32 1.1754944e-38, %v817
    %v819 = vsel %vm816, %v818, %v814
    %v820 = vmul.f32 1.0, %v819
    %v821 = vtanh.pop %v801
    %v823 = vrot.slane %v723, 7
    %v825 = vmul.f32 %v820, %v823
    %827 = vrot.lane.b32.xlu0 %v821, 64
    %v828 = vpop.permute.xlu0 %827
    %v830 = vmul.f32 %v820, %v828
    %832 = vrot.lane.b32.xlu0 %v830, 32
    %v833 = vpop.permute.xlu0 %832
    %v835 = vadd.f32 %v825, %v833
    %v836 = vtanh.pop %v835
    %838 = vrot.lane.b32.xlu0 %v836, 64
    %v839 = vpop.permute.xlu0 %838
    %v841 = vmul.f32 %v820, %v839
    %v842 = vld [vmem:[%s10] sm:$0xff]
    %v843 = vld [vmem:[%s10 + $0x8] sm:$0xff]
    %v844 = vld [vmem:[%s10 + $0x10] sm:$0xff]
    %v845 = vld [vmem:[%s10 + $0x18] sm:$0xff]
    %v846 = vld [vmem:[%s11] sm:$0x1]
    %v848 = vrot.slane %v841, 1
    %849 = vrot.lane.b32.xlu0 %v848, 32
    %v850 = vpop.permute.xlu0 %849
    %v851 = vsel %vm669, %v850, 0
    %853 = vmatpush.msra.mxu0 0.0
    %854 = vmatpush.msra.mxu0 0.0
    %855 = vmatpush.msra.mxu0 0.0
    %856 = vmatpush.msra.mxu0 0.0
    %857 = vmatpush.msra.mxu0 0.0
    %858 = vmatpush.msra.mxu0 0.0
    %859 = vmatpush.msra.mxu0 0.0
    %860 = vmatpush.msra.mxu0 0.0
    %861 = vmatpush.msra.mxu0 0.0
    %862 = vmatpush.msra.mxu0 0.0
    %863 = vmatpush.msra.mxu0 0.0
    %864 = vmatpush.msra.mxu0 0.0
    %865 = vmatpush.msra.mxu0 %v845
    %866 = vmatpush.msra.mxu0 %v844
    %867 = vmatpush.msra.mxu0 %v843
    %868 = vmatpush.msra.mxu0 %v842
    %869 = vmatmul.f32.gmra.mxu0 %v851
    %v870 = vpop.f32.mrf.mxu0
    %v871 = vadd.f32 %v846, %v870
    %872 = vdwg.mxu0
    %v873 = vsel %vm760, %v871, -inf
    %874 = vmax.xlane.f32.xlu0 %v873
    %v875 = vpop.xlane.xlu0 %874
    %v876 = vsub.f32 %v871, %v875
    %v877 = vmul.f32 %v876, 1.442695
    %v878 = vpow.pop %v877
    %v879 = vsel %vm760, %v878, 0.0
    %880 = vadd.xlane.f32.xlu0 %v879
    %v881 = vpop.xlane.xlu0 %880
    %v882 = vlog2.pop %v881
    %v883 = vmul.f32 %v882, 0.6931472
    %v884 = vsub.f32 %v876, %v883
    %885 = vst.msk [vmem:[#allocation2 + $0x1] sm:$0x1] %vm760, %v884
    %v886 = vld [vmem:[%s9] sm:$0xff]
    %v887 = vld [vmem:[%s9 + $0x8] sm:$0xff]
    %v888 = vld [vmem:[%s9 + $0x10] sm:$0xff]
    %v889 = vld [vmem:[%s9 + $0x18] sm:$0xff]
    %890 = vmatpush.msra.mxu0 0.0
    %891 = vmatpush.msra.mxu0 0.0
    %892 = vmatpush.msra.mxu0 0.0
    %893 = vmatpush.msra.mxu0 0.0
    %894 = vmatpush.msra.mxu0 0.0
    %895 = vmatpush.msra.mxu0 0.0
    %896 = vmatpush.msra.mxu0 0.0
    %897 = vmatpush.msra.mxu0 0.0
    %898 = vmatpush.msra.mxu0 0.0
    %899 = vmatpush.msra.mxu0 0.0
    %900 = vmatpush.msra.mxu0 0.0
    %901 = vmatpush.msra.mxu0 0.0
    %902 = vmatpush.msra.mxu0 %v889
    %903 = vmatpush.msra.mxu0 %v888
    %904 = vmatpush.msra.mxu0 %v887
    %905 = vmatpush.msra.mxu0 %v886
    %906 = vmatmul.f32.gmra.mxu0 %v851
    %v907 = vpop.f32.mrf.mxu0
    %v908 = vadd.f32 0.0, %v907
    %909 = vdwg.mxu0
    %v911 = vrot.slane %v908, 6
    %v913 = vadd.f32 %v664, %v911
    %v914 = vxor.u32 %v913, 2147483648
    %v915 = vmul.f32 %v914, 1.442695
    %v916 = vpow.pop %v915
    %v917 = vadd.f32 %v916, 1.0
    %v918 = vrcp.pop %v917
    %v919 = vmul.f32 %v917, %v918
    %v920 = vsub.f32 1.0, %v919
    %v921 = vmul.f32 %v918, %v920
    %v922 = vadd.f32 %v918, %v921
    %vm923 = vweird.f32 %v917
    %vm924 = vweird.f32 %v918
    %vm925 = vmor %vm923, %vm924
    %v926 = vsel %vm925, %v918, %v922
    %v927 = vand.u32 2147483647, %v917
    %vm928 = vcmp.eq.f32.partialorder %v927, 8.507059e+37
    %v929 = vand.u32 %v917, 2147483648
    %v930 = vor.u32 1.1754944e-38, %v929
    %v931 = vsel %vm928, %v930, %v926
    %v932 = vmul.f32 1.0, %v931
    %v933 = vtanh.pop %v913
    %v935 = vrot.slane %v835, 7
    %v937 = vmul.f32 %v932, %v935
    %939 = vrot.lane.b32.xlu0 %v933, 64
    %v940 = vpop.permute.xlu0 %939
    %v942 = vmul.f32 %v932, %v940
    %944 = vrot.lane.b32.xlu0 %v942, 32
    %v945 = vpop.permute.xlu0 %944
    %v947 = vadd.f32 %v937, %v945
    %v948 = vtanh.pop %v947
    %950 = vrot.lane.b32.xlu0 %v948, 64
    %v951 = vpop.permute.xlu0 %950
    %v953 = vmul.f32 %v932, %v951
    %v954 = vld [vmem:[%s10] sm:$0xff]
    %v955 = vld [vmem:[%s10 + $0x8] sm:$0xff]
    %v956 = vld [vmem:[%s10 + $0x10] sm:$0xff]
    %v957 = vld [vmem:[%s10 + $0x18] sm:$0xff]
    %v958 = vld [vmem:[%s11] sm:$0x1]
    %v960 = vrot.slane %v953, 2
    %961 = vrot.lane.b32.xlu0 %v960, 32
    %v962 = vpop.permute.xlu0 %961
    %v963 = vsel %vm669, %v962, 0
    %965 = vmatpush.msra.mxu0 0.0
    %966 = vmatpush.msra.mxu0 0.0
    %967 = vmatpush.msra.mxu0 0.0
    %968 = vmatpush.msra.mxu0 0.0
    %969 = vmatpush.msra.mxu0 0.0
    %970 = vmatpush.msra.mxu0 0.0
    %971 = vmatpush.msra.mxu0 0.0
    %972 = vmatpush.msra.mxu0 0.0
    %973 = vmatpush.msra.mxu0 0.0
    %974 = vmatpush.msra.mxu0 0.0
    %975 = vmatpush.msra.mxu0 0.0
    %976 = vmatpush.msra.mxu0 0.0
    %977 = vmatpush.msra.mxu0 %v957
    %978 = vmatpush.msra.mxu0 %v956
    %979 = vmatpush.msra.mxu0 %v955
    %980 = vmatpush.msra.mxu0 %v954
    %981 = vmatmul.f32.gmra.mxu0 %v963
    %v982 = vpop.f32.mrf.mxu0
    %v983 = vadd.f32 %v958, %v982
    %984 = vdwg.mxu0
    %v985 = vsel %vm760, %v983, -inf
    %986 = vmax.xlane.f32.xlu0 %v985
    %v987 = vpop.xlane.xlu0 %986
    %v988 = vsub.f32 %v983, %v987
    %v989 = vmul.f32 %v988, 1.442695
    %v990 = vpow.pop %v989
    %v991 = vsel %vm760, %v990, 0.0
    %992 = vadd.xlane.f32.xlu0 %v991
    %v993 = vpop.xlane.xlu0 %992
    %v994 = vlog2.pop %v993
    %v995 = vmul.f32 %v994, 0.6931472
    %v996 = vsub.f32 %v988, %v995
    %997 = vst.msk [vmem:[#allocation2 + $0x2] sm:$0x1] %vm760, %v996
    %v998 = vld [vmem:[%s9] sm:$0xff]
    %v999 = vld [vmem:[%s9 + $0x8] sm:$0xff]
    %v1000 = vld [vmem:[%s9 + $0x10] sm:$0xff]
    %v1001 = vld [vmem:[%s9 + $0x18] sm:$0xff]
    %1002 = vmatpush.msra.mxu0 0.0
    %1003 = vmatpush.msra.mxu0 0.0
    %1004 = vmatpush.msra.mxu0 0.0
    %1005 = vmatpush.msra.mxu0 0.0
    %1006 = vmatpush.msra.mxu0 0.0
    %1007 = vmatpush.msra.mxu0 0.0
    %1008 = vmatpush.msra.mxu0 0.0
    %1009 = vmatpush.msra.mxu0 0.0
    %1010 = vmatpush.msra.mxu0 0.0
    %1011 = vmatpush.msra.mxu0 0.0
    %1012 = vmatpush.msra.mxu0 0.0
    %1013 = vmatpush.msra.mxu0 0.0
    %1014 = vmatpush.msra.mxu0 %v1001
    %1015 = vmatpush.msra.mxu0 %v1000
    %1016 = vmatpush.msra.mxu0 %v999
    %1017 = vmatpush.msra.mxu0 %v998
    %1018 = vmatmul.f32.gmra.mxu0 %v963
    %v1019 = vpop.f32.mrf.mxu0
    %v1020 = vadd.f32 0.0, %v1019
    %1021 = vdwg.mxu0
    %v1023 = vrot.slane %v1020, 5
    %v1025 = vadd.f32 %v664, %v1023
    %v1026 = vxor.u32 %v1025, 2147483648
    %v1027 = vmul.f32 %v1026, 1.442695
    %v1028 = vpow.pop %v1027
    %v1029 = vadd.f32 %v1028, 1.0
    %v1030 = vrcp.pop %v1029
    %v1031 = vmul.f32 %v1029, %v1030
    %v1032 = vsub.f32 1.0, %v1031
    %v1033 = vmul.f32 %v1030, %v1032
    %v1034 = vadd.f32 %v1030, %v1033
    %vm1035 = vweird.f32 %v1029
    %vm1036 = vweird.f32 %v1030
    %vm1037 = vmor %vm1035, %vm1036
    %v1038 = vsel %vm1037, %v1030, %v1034
    %v1039 = vand.u32 2147483647, %v1029
    %vm1040 = vcmp.eq.f32.partialorder %v1039, 8.507059e+37
    %v1041 = vand.u32 %v1029, 2147483648
    %v1042 = vor.u32 1.1754944e-38, %v1041
    %v1043 = vsel %vm1040, %v1042, %v1038
    %v1044 = vmul.f32 1.0, %v1043
    %v1045 = vtanh.pop %v1025
    %v1047 = vrot.slane %v947, 7
    %v1049 = vmul.f32 %v1044, %v1047
    %1051 = vrot.lane.b32.xlu0 %v1045, 64
    %v1052 = vpop.permute.xlu0 %1051
    %v1054 = vmul.f32 %v1044, %v1052
    %1056 = vrot.lane.b32.xlu0 %v1054, 32
    %v1057 = vpop.permute.xlu0 %1056
    %v1059 = vadd.f32 %v1049, %v1057
    %v1060 = vtanh.pop %v1059
    %1062 = vrot.lane.b32.xlu0 %v1060, 64
    %v1063 = vpop.permute.xlu0 %1062
    %v1065 = vmul.f32 %v1044, %v1063
    %v1066 = vld [vmem:[%s10] sm:$0xff]
    %v1067 = vld [vmem:[%s10 + $0x8] sm:$0xff]
    %v1068 = vld [vmem:[%s10 + $0x10] sm:$0xff]
    %v1069 = vld [vmem:[%s10 + $0x18] sm:$0xff]
    %v1070 = vld [vmem:[%s11] sm:$0x1]
    %v1072 = vrot.slane %v1065, 3
    %1073 = vrot.lane.b32.xlu0 %v1072, 32
    %v1074 = vpop.permute.xlu0 %1073
    %v1075 = vsel %vm669, %v1074, 0
    %1077 = vmatpush.msra.mxu0 0.0
    %1078 = vmatpush.msra.mxu0 0.0
    %1079 = vmatpush.msra.mxu0 0.0
    %1080 = vmatpush.msra.mxu0 0.0
    %1081 = vmatpush.msra.mxu0 0.0
    %1082 = vmatpush.msra.mxu0 0.0
    %1083 = vmatpush.msra.mxu0 0.0
    %1084 = vmatpush.msra.mxu0 0.0
    %1085 = vmatpush.msra.mxu0 0.0
    %1086 = vmatpush.msra.mxu0 0.0
    %1087 = vmatpush.msra.mxu0 0.0
    %1088 = vmatpush.msra.mxu0 0.0
    %1089 = vmatpush.msra.mxu0 %v1069
    %1090 = vmatpush.msra.mxu0 %v1068
    %1091 = vmatpush.msra.mxu0 %v1067
    %1092 = vmatpush.msra.mxu0 %v1066
    %1093 = vmatmul.f32.gmra.mxu0 %v1075
    %v1094 = vpop.f32.mrf.mxu0
    %v1095 = vadd.f32 %v1070, %v1094
    %1096 = vdwg.mxu0
    %v1097 = vsel %vm760, %v1095, -inf
    %1098 = vmax.xlane.f32.xlu0 %v1097
    %v1099 = vpop.xlane.xlu0 %1098
    %v1100 = vsub.f32 %v1095, %v1099
    %v1101 = vmul.f32 %v1100, 1.442695
    %v1102 = vpow.pop %v1101
    %v1103 = vsel %vm760, %v1102, 0.0
    %1104 = vadd.xlane.f32.xlu0 %v1103
    %v1105 = vpop.xlane.xlu0 %1104
    %v1106 = vlog2.pop %v1105
    %v1107 = vmul.f32 %v1106, 0.6931472
    %v1108 = vsub.f32 %v1100, %v1107
    %1109 = vst.msk [vmem:[#allocation2 + $0x3] sm:$0x1] %vm760, %v1108
    %v1110 = vld [vmem:[%s9] sm:$0xff]
    %v1111 = vld [vmem:[%s9 + $0x8] sm:$0xff]
    %v1112 = vld [vmem:[%s9 + $0x10] sm:$0xff]
    %v1113 = vld [vmem:[%s9 + $0x18] sm:$0xff]
    %1114 = vmatpush.msra.mxu0 0.0
    %1115 = vmatpush.msra.mxu0 0.0
    %1116 = vmatpush.msra.mxu0 0.0
    %1117 = vmatpush.msra.mxu0 0.0
    %1118 = vmatpush.msra.mxu0 0.0
    %1119 = vmatpush.msra.mxu0 0.0
    %1120 = vmatpush.msra.mxu0 0.0
    %1121 = vmatpush.msra.mxu0 0.0
    %1122 = vmatpush.msra.mxu0 0.0
    %1123 = vmatpush.msra.mxu0 0.0
    %1124 = vmatpush.msra.mxu0 0.0
    %1125 = vmatpush.msra.mxu0 0.0
    %1126 = vmatpush.msra.mxu0 %v1113
    %1127 = vmatpush.msra.mxu0 %v1112
    %1128 = vmatpush.msra.mxu0 %v1111
    %1129 = vmatpush.msra.mxu0 %v1110
    %1130 = vmatmul.f32.gmra.mxu0 %v1075
    %v1131 = vpop.f32.mrf.mxu0
    %v1132 = vadd.f32 0.0, %v1131
    %1133 = vdwg.mxu0
    %v1135 = vrot.slane %v1132, 4
    %v1137 = vadd.f32 %v664, %v1135
    %v1138 = vxor.u32 %v1137, 2147483648
    %v1139 = vmul.f32 %v1138, 1.442695
    %v1140 = vpow.pop %v1139
    %v1141 = vadd.f32 %v1140, 1.0
    %v1142 = vrcp.pop %v1141
    %v1143 = vmul.f32 %v1141, %v1142
    %v1144 = vsub.f32 1.0, %v1143
    %v1145 = vmul.f32 %v1142, %v1144
    %v1146 = vadd.f32 %v1142, %v1145
    %vm1147 = vweird.f32 %v1141
    %vm1148 = vweird.f32 %v1142
    %vm1149 = vmor %vm1147, %vm1148
    %v1150 = vsel %vm1149, %v1142, %v1146
    %v1151 = vand.u32 2147483647, %v1141
    %vm1152 = vcmp.eq.f32.partialorder %v1151, 8.507059e+37
    %v1153 = vand.u32 %v1141, 2147483648
    %v1154 = vor.u32 1.1754944e-38, %v1153
    %v1155 = vsel %vm1152, %v1154, %v1150
    %v1156 = vmul.f32 1.0, %v1155
    %v1157 = vtanh.pop %v1137
    %v1159 = vrot.slane %v1059, 7
    %v1161 = vmul.f32 %v1156, %v1159
    %1163 = vrot.lane.b32.xlu0 %v1157, 64
    %v1164 = vpop.permute.xlu0 %1163
    %v1166 = vmul.f32 %v1156, %v1164
    %1168 = vrot.lane.b32.xlu0 %v1166, 32
    %v1169 = vpop.permute.xlu0 %1168
    %v1171 = vadd.f32 %v1161, %v1169
    %v1172 = vtanh.pop %v1171
    %1174 = vrot.lane.b32.xlu0 %v1172, 64
    %v1175 = vpop.permute.xlu0 %1174
    %v1177 = vmul.f32 %v1156, %v1175
    %v1178 = vld [vmem:[%s10] sm:$0xff]
    %v1179 = vld [vmem:[%s10 + $0x8] sm:$0xff]
    %v1180 = vld [vmem:[%s10 + $0x10] sm:$0xff]
    %v1181 = vld [vmem:[%s10 + $0x18] sm:$0xff]
    %v1182 = vld [vmem:[%s11] sm:$0x1]
    %v1184 = vrot.slane %v1177, 4
    %1185 = vrot.lane.b32.xlu0 %v1184, 32
    %v1186 = vpop.permute.xlu0 %1185
    %v1187 = vsel %vm669, %v1186, 0
    %1189 = vmatpush.msra.mxu0 0.0
    %1190 = vmatpush.msra.mxu0 0.0
    %1191 = vmatpush.msra.mxu0 0.0
    %1192 = vmatpush.msra.mxu0 0.0
    %1193 = vmatpush.msra.mxu0 0.0
    %1194 = vmatpush.msra.mxu0 0.0
    %1195 = vmatpush.msra.mxu0 0.0
    %1196 = vmatpush.msra.mxu0 0.0
    %1197 = vmatpush.msra.mxu0 0.0
    %1198 = vmatpush.msra.mxu0 0.0
    %1199 = vmatpush.msra.mxu0 0.0
    %1200 = vmatpush.msra.mxu0 0.0
    %1201 = vmatpush.msra.mxu0 %v1181
    %1202 = vmatpush.msra.mxu0 %v1180
    %1203 = vmatpush.msra.mxu0 %v1179
    %1204 = vmatpush.msra.mxu0 %v1178
    %1205 = vmatmul.f32.gmra.mxu0 %v1187
    %v1206 = vpop.f32.mrf.mxu0
    %v1207 = vadd.f32 %v1182, %v1206
    %1208 = vdwg.mxu0
    %v1209 = vsel %vm760, %v1207, -inf
    %1210 = vmax.xlane.f32.xlu0 %v1209
    %v1211 = vpop.xlane.xlu0 %1210
    %v1212 = vsub.f32 %v1207, %v1211
    %v1213 = vmul.f32 %v1212, 1.442695
    %v1214 = vpow.pop %v1213
    %v1215 = vsel %vm760, %v1214, 0.0
    %1216 = vadd.xlane.f32.xlu0 %v1215
    %v1217 = vpop.xlane.xlu0 %1216
    %v1218 = vlog2.pop %v1217
    %v1219 = vmul.f32 %v1218, 0.6931472
    %v1220 = vsub.f32 %v1212, %v1219
    %1221 = vst.msk [vmem:[#allocation2 + $0x4] sm:$0x1] %vm760, %v1220
    // Predicated region
    $region50: #{tpu_custom_call.1} parent=1 // pred_check
      _
    $region51: #{tpu_custom_call.1} parent=1 // pred_check_branch
      %1223 = sbr.rel (0) target = $region53
    $region52: #{tpu_custom_call.1} parent=1 // pred_region
      %1225 = vsyncadd [#allocation3], 0
      %s1227 = sshll.u32 [#allocation2], 4
      %s1228 = int_to_ptr.vmem [resolvable:$true] %s1227
      %s1229 = sshll.u32 %s12, 4
      %s1230 = int_to_ptr.hbm [resolvable:$true] %s1229
      %1232 = dma.vmem_to_hbm [thread:$0]  %s1228, 128, %s1230, [#allocation3]
    $region53: #{tpu_custom_call.1} parent=1 // pred_fallthru
      _
    // Predicated region
    $region54: #{tpu_custom_call.1} parent=1 // pred_check
      _
    $region55: #{tpu_custom_call.1} parent=1 // pred_check_branch
      %1234 = sbr.rel (0) target = $region57
    $region56: #{tpu_custom_call.1} parent=1 // pred_region
      %1236 = dma.done [#allocation3], 128
    $region57: #{tpu_custom_call.1} parent=1 // pred_fallthru
      _
    %1237 = vsyncpa [#allocation3], 1

</llo_original>
